<compile_context>
chip_gen: v5e
topology: v5e:2x2
jax: 0.10.0
libtpu: 0.0.40
codegen_flags: <defaults>
</compile_context>

<pallas_src>
import functools

import jax
import jax.numpy as jnp
from jax.experimental import pallas as pl
from jax.experimental.pallas import tpu as pltpu


def _round_up(x, m):
    return ((x + m - 1) // m) * m


def _cdiv(a, b):
    return -(-a // b)


def _vmem_capacity_bytes():
    try:
        return int(getattr(pltpu.get_tpu_info(), "vmem_capacity_bytes",
                           64 * 1024 * 1024))
    except Exception:
        return 64 * 1024 * 1024


# ----------------------------------------------------------------------------
# Pallas kernel: per-group scatter SUM of the predicted masks (both frames)
# ----------------------------------------------------------------------------
def _scatter_sum_kernel(idx1_ref, idx2_ref, *rest,
                        num_groups, num_layers, compute_dtype):
    """Grid: (batch, chunk, tile) -- (parallel, parallel, arbitrary).

    idx*_ref : (1, 1, tile_p) int32   GT group index per point (frame 0 / -1)
    rest     : L mask refs of frame 0, then L mask refs of frame -1,
               each (1, tile_p, Q); followed by the fused output ref
               (1, 1, 2L, G, Q) f32 (resident accumulator across tiles).
    """
    L = num_layers
    m1_refs = rest[:L]
    m2_refs = rest[L:2 * L]
    sums_ref = rest[2 * L]

    t = pl.program_id(2)

    @pl.when(t == 0)
    def _init():
        sums_ref[...] = jnp.zeros_like(sums_ref)

    # (G,1) group-id column compared against the (1,tile_p) index row:
    # cheaper than materializing a full (G,tile_p) iota every grid step.
    gid = jax.lax.broadcasted_iota(jnp.int32, (num_groups, 1), 0)
    oh1 = (idx1_ref[0] == gid).astype(compute_dtype)          # (G, tile_p)
    oh2 = (idx2_ref[0] == gid).astype(compute_dtype)

    for l in range(L):                                        # static unroll
        m1 = m1_refs[l][0].astype(compute_dtype)              # (tile_p, Q)
        m2 = m2_refs[l][0].astype(compute_dtype)
        sums_ref[0, 0, l, :, :] += jnp.dot(
            oh1, m1, preferred_element_type=jnp.float32)
        sums_ref[0, 0, L + l, :, :] += jnp.dot(
            oh2, m2, preferred_element_type=jnp.float32)


def consistency_scatter_sums(idx1, idx2, masks1_layers, masks2_layers,
                             num_objects, *, tile_p=None, num_chunks=None,
                             compute_dtype=jnp.bfloat16):
    """idx*: (B, 1, P) int32.  masks*_layers: list of L arrays, each (B, P, Q).

    Returns (sum1, sum2): (B, L, G_pad, Q) f32 per-group scatter sums over P.
    """
    L = len(masks1_layers)
    assert len(masks2_layers) == L
    B, P, Q = masks1_layers[0].shape
    in_dtype = masks1_layers[0].dtype
    bpe_in = jnp.dtype(in_dtype).itemsize
    Q_pad = _round_up(Q, 128)
    G_pad = max(8, _round_up(num_objects, 8))

    # --- VMEM budgeting: keyed off the chip, lane padding accounted for ----
    vmem_cap = _vmem_capacity_bytes()
    budget = vmem_cap // 4                       # ~16 MiB (v7x) / ~32 MiB (128-MiB parts)
    acc_bytes = 2 * (2 * L * G_pad * Q_pad * 4)  # fused output, double-buffered
    per_point = 2 * L * 2 * Q_pad * bpe_in       # 2 frames x L layers x 2 bufs
    per_point += 2 * 2 * 8 * 4                   # idx blocks (sublane-padded to 8)

    if tile_p is None:
        tile_p = (budget - acc_bytes) // per_point
        tile_p = int(max(128, min(4096, (tile_p // 128) * 128)))
    tile_p = int(min(tile_p, _round_up(P, 128)))
    tile_p = max(128, (tile_p // 128) * 128)

    # --- P-chunking so v7x's two TensorCores are busy even at B == 1 -------
    tiles_total = _cdiv(P, tile_p)
    if num_chunks is None:
        num_chunks = 1 if B >= 2 else min(2, tiles_total)
    C = max(1, min(int(num_chunks), tiles_total))
    T = _cdiv(tiles_total, C)
    P_pad = C * T * tile_p

    if P_pad != P:
        pad = P_pad - P
        masks1_layers = [jnp.pad(m, ((0, 0), (0, pad), (0, 0)))
                         for m in masks1_layers]
        masks2_layers = [jnp.pad(m, ((0, 0), (0, pad), (0, 0)))
                         for m in masks2_layers]
        # padded points map to no group (index outside [0, G_pad))
        idx1 = jnp.pad(idx1, ((0, 0), (0, 0), (0, pad)), constant_values=G_pad)
        idx2 = jnp.pad(idx2, ((0, 0), (0, 0), (0, pad)), constant_values=G_pad)

    # vmem_limit derived from actual usage (+ one-hot temporaries + headroom)
    usage = acc_bytes + per_point * tile_p + 2 * G_pad * tile_p * 2
    vmem_limit = int(usage * 1.5) + 8 * 1024 * 1024
    vmem_limit = max(16 * 1024 * 1024, min(vmem_limit, vmem_cap - 2 * 1024 * 1024))

    kernel = functools.partial(_scatter_sum_kernel, num_groups=G_pad,
                               num_layers=L, compute_dtype=compute_dtype)
    idx_spec = pl.BlockSpec((1, 1, tile_p), lambda b, c, t: (b, 0, c * T + t))
    mask_spec = pl.BlockSpec((1, tile_p, Q), lambda b, c, t: (b, c * T + t, 0))
    out_spec = pl.BlockSpec((1, 1, 2 * L, G_pad, Q),
                            lambda b, c, t: (b, c, 0, 0, 0))

    sums = pl.pallas_call(
        kernel,
        out_shape=jax.ShapeDtypeStruct((B, C, 2 * L, G_pad, Q), jnp.float32),
        grid_spec=pltpu.PrefetchScalarGridSpec(
            num_scalar_prefetch=0,
            grid=(B, C, T),
            in_specs=[idx_spec, idx_spec] + [mask_spec] * (2 * L),
            out_specs=out_spec,
        ),
        compiler_params=pltpu.CompilerParams(
            dimension_semantics=("parallel", "parallel", "arbitrary"),
            vmem_limit_bytes=vmem_limit),
    )(idx1, idx2, *masks1_layers, *masks2_layers)

    sums = jnp.sum(sums, axis=1)                 # reduce chunks -> (B, 2L, G, Q)
    return sums[:, :L], sums[:, L:]


# ----------------------------------------------------------------------------
# Tiny JAX epilogue (O(B*L*G*Q)): scatter-mean divide, object mask, soft CE
# ----------------------------------------------------------------------------
def _consistency_epilogue(sum1, sum2, idx1, idx2, num_objects):
    G = num_objects
    f1s = sum1[:, :, :G, :]
    f2s = sum2[:, :, :G, :]

    def counts(idx):                              # idx: (B, 1, P) int32
        return jax.vmap(lambda i: jax.ops.segment_sum(
            jnp.ones(i.shape, jnp.float32), i, num_segments=G))(idx[:, 0, :])

    cnt1 = counts(idx1)                           # (B, G)
    cnt2 = counts(idx2)
    # scatter-mean with empty groups -> 0 (as torch_scatter 'mean')
    f1 = f1s / jnp.maximum(cnt1, 1.0)[:, None, :, None]
    f2 = f2s / jnp.maximum(cnt2, 1.0)[:, None, :, None]

    mask_obj = jnp.logical_and(jnp.sum(f1[:, 0], axis=-1) != 0.0,
                               jnp.sum(f2[:, 0], axis=-1) != 0.0)   # (B, G)
    ce = -jnp.sum(jax.nn.softmax(f1, axis=-1) * jax.nn.log_softmax(f2, axis=-1),
                  axis=-1)                                          # (B, L, G)
    mf = mask_obj.astype(jnp.float32)
    nv = jnp.sum(mf, axis=-1)                                       # (B,)
    per_b = jnp.sum(ce * mf[:, None, :], axis=-1) / jnp.maximum(nv, 1.0)[:, None]
    # torch would emit NaN for a batch element with zero valid objects; we
    # contribute 0 instead (documented divergence, no host sync).
    per_b = jnp.where(nv[:, None] > 0.0, per_b, 0.0)
    loss = jnp.sum(per_b, axis=0)                                   # (L,)
    n_obj = jnp.sum(mf)
    return loss, n_obj


# ----------------------------------------------------------------------------
# Module-equivalent wrapper
# ----------------------------------------------------------------------------
class ConsistencyPallas:
    def __init__(self, num_points=-1, compute_aux_loss=True, cost_consistency=1.0,
                 tile_p=None, num_chunks=None, compute_dtype=jnp.bfloat16):
        self.num_points = num_points
        self.compute_aux_loss = compute_aux_loss
        self.cost_consistency = cost_consistency
        self.tile_p = tile_p
        self.num_chunks = num_chunks
        self.compute_dtype = compute_dtype

    @staticmethod
    def _batched(x):
        # Fast path: the model already hands us a (B, P, Q) array (no copy).
        # Torch-style list of per-batch (P, Q) tensors falls back to a stack.
        if isinstance(x, (list, tuple)):
            return jnp.stack([jnp.asarray(v) for v in x], axis=0)
        return jnp.asarray(x)

    @classmethod
    def _frame_layers(cls, frame):
        layers = [cls._batched(frame['pred_masks'])]
        layers += [cls._batched(a['pred_masks'])
                   for a in frame.get('aux_outputs', [])]
        return layers

    @staticmethod
    def _gt_index(target_list):
        idx = [jnp.argmax(jnp.asarray(t['masks']).astype(jnp.int32), axis=0)
               for t in target_list]
        return jnp.stack(idx, axis=0).astype(jnp.int32)[:, None, :]   # (B,1,P)

    def __call__(self, outputs, targets):
        if self.num_points != -1:
            raise NotImplementedError(
                'num_points not implemented for consistency loss')

        m1_layers = self._frame_layers(outputs[0])
        m2_layers = self._frame_layers(outputs[-1])
        # torch: fmap1 is built from detached frame-0 predictions
        m1_layers = [jax.lax.stop_gradient(m) for m in m1_layers]
        L = len(m1_layers)

        G = int(jnp.asarray(targets[0][0]['masks']).shape[0])
        idx1 = self._gt_index(targets[0])
        idx2 = self._gt_index(targets[-1])

        sum1, sum2 = consistency_scatter_sums(
            idx1, idx2, m1_layers, m2_layers, G,
            tile_p=self.tile_p, num_chunks=self.num_chunks,
            compute_dtype=self.compute_dtype)
        loss, n_obj = _consistency_epilogue(sum1, sum2, idx1, idx2, G)

        # n_objects == 0: torch returns unnormalized loss[0] and drops the aux
        # keys; we keep the keys and guard the division on-device (no sync).
        denom = jnp.where(n_obj > 0, jnp.maximum(n_obj, 1.0), 1.0)
        loss_n = loss / denom
        out = {'loss_consistency': loss_n[0]}
        out.update({f'loss_consistency_{i}': loss_n[i + 1] for i in range(L - 1)})
        return out, loss, n_obj


# ----------------------------------------------------------------------------
# Pure-JAX reference (mirrors the torch semantics) for validation
# ----------------------------------------------------------------------------
def _ref_loss(masks1, masks2, tgt1, tgt2):
    # masks*: (B, L, P, Q) f32; tgt*: (B, G, P) bool
    B, L, P, Q = masks1.shape
    G = tgt1.shape[1]
    loss = jnp.zeros((L,), jnp.float32)
    n_obj = jnp.zeros((), jnp.float32)
    for bid in range(B):
        i1 = jnp.argmax(tgt1[bid].astype(jnp.int32), axis=0)
        i2 = jnp.argmax(tgt2[bid].astype(jnp.int32), axis=0)

        def scatter_mean(m, idx):  # m: (L, P, Q)
            s = jax.vmap(lambda ml: jax.ops.segment_sum(ml, idx, num_segments=G))(m)
            c = jax.ops.segment_sum(jnp.ones((P,), jnp.float32), idx, num_segments=G)
            return s / jnp.maximum(c, 1.0)[None, :, None]

        f1 = scatter_mean(masks1[bid], i1)
        f2 = scatter_mean(masks2[bid], i2)
        mo = jnp.logical_and(f1[0].sum(1) != 0.0, f2[0].sum(1) != 0.0)
        ce = -jnp.sum(jax.nn.softmax(f1, axis=2) * jax.nn.log_softmax(f2, axis=2),
                      axis=2)                                          # (L, G)
        loss = loss + jnp.sum(ce * mo[None, :].astype(jnp.float32), axis=1) / jnp.sum(mo)
        n_obj = n_obj + jnp.sum(mo)
    return loss, n_obj


# ----------------------------------------------------------------------------
# Demo
# ----------------------------------------------------------------------------
if __name__ == "__main__":
    key = jax.random.PRNGKey(0)
    B, L, P, Q, G = 2, 4, 384, 8, 8      # batch, layers(1+3 aux), points, queries, objects
    n_frames = 3
    keys = jax.random.split(key, n_frames * L + 2)

    # Synthetic "outputs": pre-batched (B, P, Q) arrays per layer (fast path)
    outputs = []
    kidx = 0
    for fid in range(n_frames):
        layer_arrays = []
        for _ in range(L):
            layer_arrays.append(jax.random.normal(keys[kidx], (B, P, Q), jnp.float32))
            kidx += 1
        outputs.append({
            'pred_masks': layer_arrays[0],
            'aux_outputs': [{'pred_masks': layer_arrays[1 + a]} for a in range(L - 1)],
        })

    # Synthetic "targets": per frame, per batch element, boolean GT masks (G, P)
    def make_targets(k):
        idx_gt = jax.random.randint(k, (B, P), 0, G)
        masks = (idx_gt[:, None, :] == jnp.arange(G)[None, :, None])   # (B, G, P)
        return [{'masks': masks[b]} for b in range(B)], masks

    tgt_first, tgt1_arr = make_targets(keys[-2])
    tgt_last, tgt2_arr = make_targets(keys[-1])
    targets = [tgt_first] + [tgt_first] * (n_frames - 2) + [tgt_last]

    # Pallas kernel path (small tile_p / 2 chunks to exercise tiling + padding)
    criterion = ConsistencyPallas(tile_p=128, num_chunks=2)
    out_dict, loss_k, nobj_k = criterion(outputs, targets)
    loss_k = jax.block_until_ready(loss_k)
    nobj_k = jax.block_until_ready(nobj_k)

    # Reference path (same bf16-rounded masks the kernel uses, f32 math)
    def frame_stack(fr):
        layers = [fr['pred_masks']] + [a['pred_masks'] for a in fr['aux_outputs']]
        return jnp.stack([jnp.asarray(x) for x in layers], axis=1)     # (B, L, P, Q)

    m1 = frame_stack(outputs[0]).astype(jnp.bfloat16).astype(jnp.float32)
    m2 = frame_stack(outputs[-1]).astype(jnp.bfloat16).astype(jnp.float32)
    loss_ref, nobj_ref = _ref_loss(m1, m2, tgt1_arr, tgt2_arr)
    loss_ref = jax.block_until_ready(loss_ref)

    assert jnp.allclose(nobj_k, nobj_ref), (nobj_k, nobj_ref)
    assert jnp.allclose(loss_k, loss_ref, rtol=2e-3, atol=1e-4), (loss_k, loss_ref)

    # Final reported values use the same two-step normalization as torch.
    final_ref = loss_ref / nobj_ref
    assert jnp.allclose(out_dict['loss_consistency'], final_ref[0],
                        rtol=2e-3, atol=1e-4)
    assert jnp.allclose(out_dict['loss_consistency_0'], final_ref[1],
                        rtol=2e-3, atol=1e-4)
    jax.block_until_ready(out_dict['loss_consistency'])

    print("KERNEL_OK")
</pallas_src>

<mosaic_0001>
module attributes {stable_mosaic.version = 11 : i64} {
  func.func @_scatter_sum_kernel(%arg0: i32, %arg1: i32, %arg2: i32, %arg3: memref<1x1x128xi32, #tpu.memory_space<vmem>>, %arg4: memref<1x1x128xi32, #tpu.memory_space<vmem>>, %arg5: memref<1x128x8xf32, #tpu.memory_space<vmem>>, %arg6: memref<1x128x8xf32, #tpu.memory_space<vmem>>, %arg7: memref<1x128x8xf32, #tpu.memory_space<vmem>>, %arg8: memref<1x128x8xf32, #tpu.memory_space<vmem>>, %arg9: memref<1x128x8xf32, #tpu.memory_space<vmem>>, %arg10: memref<1x128x8xf32, #tpu.memory_space<vmem>>, %arg11: memref<1x128x8xf32, #tpu.memory_space<vmem>>, %arg12: memref<1x128x8xf32, #tpu.memory_space<vmem>>, %arg13: memref<1x1x8x8x8xf32, #tpu.memory_space<vmem>>) attributes {dimension_semantics = [#tpu.dimension_semantics<parallel>, #tpu.dimension_semantics<parallel>, #tpu.dimension_semantics<arbitrary>], iteration_bounds = array<i64: 2, 2, 2>, scalar_prefetch = 0 : i64, scratch_operands = 0 : i64, tpu.core_type = #tpu.core_type<tc>, window_params = [{transform_indices = @transform_0, window_bounds = array<i64: 1, 1, 128>}, {transform_indices = @transform_1, window_bounds = array<i64: 1, 1, 128>}, {transform_indices = @transform_2, window_bounds = array<i64: 1, 128, 8>}, {transform_indices = @transform_3, window_bounds = array<i64: 1, 128, 8>}, {transform_indices = @transform_4, window_bounds = array<i64: 1, 128, 8>}, {transform_indices = @transform_5, window_bounds = array<i64: 1, 128, 8>}, {transform_indices = @transform_6, window_bounds = array<i64: 1, 128, 8>}, {transform_indices = @transform_7, window_bounds = array<i64: 1, 128, 8>}, {transform_indices = @transform_8, window_bounds = array<i64: 1, 128, 8>}, {transform_indices = @transform_9, window_bounds = array<i64: 1, 128, 8>}, {transform_indices = @transform_10, window_bounds = array<i64: 1, 1, 8, 8, 8>}]} {
    %c0_i32 = arith.constant 0 : i32
    %0 = arith.cmpi eq, %arg2, %c0_i32 : i32
    %1 = arith.extui %0 : i1 to i32
    %c0_i32_0 = arith.constant 0 : i32
    %2 = arith.cmpi ne, %1, %c0_i32_0 : i32
    scf.if %2 {
      %cst_110 = arith.constant 0.000000e+00 : f32
      %100 = vector.broadcast %cst_110 : f32 to vector<1x1x8x8x8xf32>
      %c0_111 = arith.constant 0 : index
      %c0_112 = arith.constant 0 : index
      %c0_113 = arith.constant 0 : index
      %c0_114 = arith.constant 0 : index
      %c0_115 = arith.constant 0 : index
      %101 = vector.load %arg13[%c0_111, %c0_112, %c0_113, %c0_114, %c0_115] : memref<1x1x8x8x8xf32, #tpu.memory_space<vmem>>, vector<1x1x8x8x8xf32>
      tpu.vector_store %arg13[%c0_111, %c0_112, %c0_113, %c0_114, %c0_115], %100 {strides = array<i32>} : memref<1x1x8x8x8xf32, #tpu.memory_space<vmem>>, vector<1x1x8x8x8xf32>,
    } else {
    }
    %3 = tpu.iota {dimensions = array<i32: 0>} : vector<8x1xi32>
    %c0 = arith.constant 0 : index
    %c0_1 = arith.constant 0 : index
    %c0_2 = arith.constant 0 : index
    %4 = vector.load %arg3[%c0, %c0_1, %c0_2] : memref<1x1x128xi32, #tpu.memory_space<vmem>>, vector<1x1x128xi32>
    %5 = vector.shape_cast %4 : vector<1x1x128xi32> to vector<1x128xi32>
    %6 = vector.broadcast %5 : vector<1x128xi32> to vector<8x128xi32>
    %7 = vector.broadcast %3 : vector<8x1xi32> to vector<8x128xi32>
    %8 = arith.cmpi eq, %6, %7 : vector<8x128xi32>
    %9 = arith.extui %8 : vector<8x128xi1> to vector<8x128xi32>
    %10 = arith.sitofp %9 : vector<8x128xi32> to vector<8x128xf32>
    %11 = arith.truncf %10 : vector<8x128xf32> to vector<8x128xbf16>
    %c0_3 = arith.constant 0 : index
    %c0_4 = arith.constant 0 : index
    %c0_5 = arith.constant 0 : index
    %12 = vector.load %arg4[%c0_3, %c0_4, %c0_5] : memref<1x1x128xi32, #tpu.memory_space<vmem>>, vector<1x1x128xi32>
    %13 = vector.shape_cast %12 : vector<1x1x128xi32> to vector<1x128xi32>
    %14 = vector.broadcast %13 : vector<1x128xi32> to vector<8x128xi32>
    %15 = vector.broadcast %3 : vector<8x1xi32> to vector<8x128xi32>
    %16 = arith.cmpi eq, %14, %15 : vector<8x128xi32>
    %17 = arith.extui %16 : vector<8x128xi1> to vector<8x128xi32>
    %18 = arith.sitofp %17 : vector<8x128xi32> to vector<8x128xf32>
    %19 = arith.truncf %18 : vector<8x128xf32> to vector<8x128xbf16>
    %c0_6 = arith.constant 0 : index
    %c0_7 = arith.constant 0 : index
    %c0_8 = arith.constant 0 : index
    %20 = vector.load %arg5[%c0_6, %c0_7, %c0_8] : memref<1x128x8xf32, #tpu.memory_space<vmem>>, vector<1x128x8xf32>
    %21 = vector.shape_cast %20 : vector<1x128x8xf32> to vector<128x8xf32>
    %22 = arith.truncf %21 : vector<128x8xf32> to vector<128x8xbf16>
    %c0_9 = arith.constant 0 : index
    %c0_10 = arith.constant 0 : index
    %c0_11 = arith.constant 0 : index
    %23 = vector.load %arg9[%c0_9, %c0_10, %c0_11] : memref<1x128x8xf32, #tpu.memory_space<vmem>>, vector<1x128x8xf32>
    %24 = vector.shape_cast %23 : vector<1x128x8xf32> to vector<128x8xf32>
    %25 = arith.truncf %24 : vector<128x8xf32> to vector<128x8xbf16>
    %c0_12 = arith.constant 0 : index
    %c0_13 = arith.constant 0 : index
    %c0_14 = arith.constant 0 : index
    %c0_15 = arith.constant 0 : index
    %c0_16 = arith.constant 0 : index
    %26 = vector.load %arg13[%c0_12, %c0_13, %c0_14, %c0_15, %c0_16] : memref<1x1x8x8x8xf32, #tpu.memory_space<vmem>>, vector<1x1x1x8x8xf32>
    %27 = vector.shape_cast %26 : vector<1x1x1x8x8xf32> to vector<8x8xf32>
    %cst = arith.constant dense<0.000000e+00> : vector<8x8xf32>
    %28 = tpu.matmul %11, %22, %cst {dimension_numbers = #tpu.dot_dimension_numbers<[1], [0], [0], [1], [0, 0, 1, 1], [], []>} : vector<8x128xbf16>, vector<128x8xbf16>, vector<8x8xf32> -> vector<8x8xf32>
    %29 = arith.addf %27, %28 : vector<8x8xf32>
    %c0_17 = arith.constant 0 : index
    %c0_18 = arith.constant 0 : index
    %c0_19 = arith.constant 0 : index
    %c0_20 = arith.constant 0 : index
    %c0_21 = arith.constant 0 : index
    %30 = vector.load %arg13[%c0_17, %c0_18, %c0_19, %c0_20, %c0_21] : memref<1x1x8x8x8xf32, #tpu.memory_space<vmem>>, vector<1x1x1x8x8xf32>
    %31 = vector.shape_cast %30 : vector<1x1x1x8x8xf32> to vector<8x8xf32>
    %32 = vector.shape_cast %29 : vector<8x8xf32> to vector<1x1x1x8x8xf32>
    tpu.vector_store %arg13[%c0_17, %c0_18, %c0_19, %c0_20, %c0_21], %32 {strides = array<i32>} : memref<1x1x8x8x8xf32, #tpu.memory_space<vmem>>, vector<1x1x1x8x8xf32>,
    %c0_22 = arith.constant 0 : index
    %c0_23 = arith.constant 0 : index
    %c4 = arith.constant 4 : index
    %c0_24 = arith.constant 0 : index
    %c0_25 = arith.constant 0 : index
    %33 = vector.load %arg13[%c0_22, %c0_23, %c4, %c0_24, %c0_25] : memref<1x1x8x8x8xf32, #tpu.memory_space<vmem>>, vector<1x1x1x8x8xf32>
    %34 = vector.shape_cast %33 : vector<1x1x1x8x8xf32> to vector<8x8xf32>
    %cst_26 = arith.constant dense<0.000000e+00> : vector<8x8xf32>
    %35 = tpu.matmul %19, %25, %cst_26 {dimension_numbers = #tpu.dot_dimension_numbers<[1], [0], [0], [1], [0, 0, 1, 1], [], []>} : vector<8x128xbf16>, vector<128x8xbf16>, vector<8x8xf32> -> vector<8x8xf32>
    %36 = arith.addf %34, %35 : vector<8x8xf32>
    %c0_27 = arith.constant 0 : index
    %c0_28 = arith.constant 0 : index
    %c4_29 = arith.constant 4 : index
    %c0_30 = arith.constant 0 : index
    %c0_31 = arith.constant 0 : index
    %37 = vector.load %arg13[%c0_27, %c0_28, %c4_29, %c0_30, %c0_31] : memref<1x1x8x8x8xf32, #tpu.memory_space<vmem>>, vector<1x1x1x8x8xf32>
    %38 = vector.shape_cast %37 : vector<1x1x1x8x8xf32> to vector<8x8xf32>
    %39 = vector.shape_cast %36 : vector<8x8xf32> to vector<1x1x1x8x8xf32>
    tpu.vector_store %arg13[%c0_27, %c0_28, %c4_29, %c0_30, %c0_31], %39 {strides = array<i32>} : memref<1x1x8x8x8xf32, #tpu.memory_space<vmem>>, vector<1x1x1x8x8xf32>,
    %c0_32 = arith.constant 0 : index
    %c0_33 = arith.constant 0 : index
    %c0_34 = arith.constant 0 : index
    %40 = vector.load %arg6[%c0_32, %c0_33, %c0_34] : memref<1x128x8xf32, #tpu.memory_space<vmem>>, vector<1x128x8xf32>
    %41 = vector.shape_cast %40 : vector<1x128x8xf32> to vector<128x8xf32>
    %42 = arith.truncf %41 : vector<128x8xf32> to vector<128x8xbf16>
    %c0_35 = arith.constant 0 : index
    %c0_36 = arith.constant 0 : index
    %c0_37 = arith.constant 0 : index
    %43 = vector.load %arg10[%c0_35, %c0_36, %c0_37] : memref<1x128x8xf32, #tpu.memory_space<vmem>>, vector<1x128x8xf32>
    %44 = vector.shape_cast %43 : vector<1x128x8xf32> to vector<128x8xf32>
    %45 = arith.truncf %44 : vector<128x8xf32> to vector<128x8xbf16>
    %c0_38 = arith.constant 0 : index
    %c0_39 = arith.constant 0 : index
    %c1 = arith.constant 1 : index
    %c0_40 = arith.constant 0 : index
    %c0_41 = arith.constant 0 : index
    %46 = vector.load %arg13[%c0_38, %c0_39, %c1, %c0_40, %c0_41] : memref<1x1x8x8x8xf32, #tpu.memory_space<vmem>>, vector<1x1x1x8x8xf32>
    %47 = vector.shape_cast %46 : vector<1x1x1x8x8xf32> to vector<8x8xf32>
    %cst_42 = arith.constant dense<0.000000e+00> : vector<8x8xf32>
    %48 = tpu.matmul %11, %42, %cst_42 {dimension_numbers = #tpu.dot_dimension_numbers<[1], [0], [0], [1], [0, 0, 1, 1], [], []>} : vector<8x128xbf16>, vector<128x8xbf16>, vector<8x8xf32> -> vector<8x8xf32>
    %49 = arith.addf %47, %48 : vector<8x8xf32>
    %c0_43 = arith.constant 0 : index
    %c0_44 = arith.constant 0 : index
    %c1_45 = arith.constant 1 : index
    %c0_46 = arith.constant 0 : index
    %c0_47 = arith.constant 0 : index
    %50 = vector.load %arg13[%c0_43, %c0_44, %c1_45, %c0_46, %c0_47] : memref<1x1x8x8x8xf32, #tpu.memory_space<vmem>>, vector<1x1x1x8x8xf32>
    %51 = vector.shape_cast %50 : vector<1x1x1x8x8xf32> to vector<8x8xf32>
    %52 = vector.shape_cast %49 : vector<8x8xf32> to vector<1x1x1x8x8xf32>
    tpu.vector_store %arg13[%c0_43, %c0_44, %c1_45, %c0_46, %c0_47], %52 {strides = array<i32>} : memref<1x1x8x8x8xf32, #tpu.memory_space<vmem>>, vector<1x1x1x8x8xf32>,
    %c0_48 = arith.constant 0 : index
    %c0_49 = arith.constant 0 : index
    %c5 = arith.constant 5 : index
    %c0_50 = arith.constant 0 : index
    %c0_51 = arith.constant 0 : index
    %53 = vector.load %arg13[%c0_48, %c0_49, %c5, %c0_50, %c0_51] : memref<1x1x8x8x8xf32, #tpu.memory_space<vmem>>, vector<1x1x1x8x8xf32>
    %54 = vector.shape_cast %53 : vector<1x1x1x8x8xf32> to vector<8x8xf32>
    %cst_52 = arith.constant dense<0.000000e+00> : vector<8x8xf32>
    %55 = tpu.matmul %19, %45, %cst_52 {dimension_numbers = #tpu.dot_dimension_numbers<[1], [0], [0], [1], [0, 0, 1, 1], [], []>} : vector<8x128xbf16>, vector<128x8xbf16>, vector<8x8xf32> -> vector<8x8xf32>
    %56 = arith.addf %54, %55 : vector<8x8xf32>
    %c0_53 = arith.constant 0 : index
    %c0_54 = arith.constant 0 : index
    %c5_55 = arith.constant 5 : index
    %c0_56 = arith.constant 0 : index
    %c0_57 = arith.constant 0 : index
    %57 = vector.load %arg13[%c0_53, %c0_54, %c5_55, %c0_56, %c0_57] : memref<1x1x8x8x8xf32, #tpu.memory_space<vmem>>, vector<1x1x1x8x8xf32>
    %58 = vector.shape_cast %57 : vector<1x1x1x8x8xf32> to vector<8x8xf32>
    %59 = vector.shape_cast %56 : vector<8x8xf32> to vector<1x1x1x8x8xf32>
    tpu.vector_store %arg13[%c0_53, %c0_54, %c5_55, %c0_56, %c0_57], %59 {strides = array<i32>} : memref<1x1x8x8x8xf32, #tpu.memory_space<vmem>>, vector<1x1x1x8x8xf32>,
    %c0_58 = arith.constant 0 : index
    %c0_59 = arith.constant 0 : index
    %c0_60 = arith.constant 0 : index
    %60 = vector.load %arg7[%c0_58, %c0_59, %c0_60] : memref<1x128x8xf32, #tpu.memory_space<vmem>>, vector<1x128x8xf32>
    %61 = vector.shape_cast %60 : vector<1x128x8xf32> to vector<128x8xf32>
    %62 = arith.truncf %61 : vector<128x8xf32> to vector<128x8xbf16>
    %c0_61 = arith.constant 0 : index
    %c0_62 = arith.constant 0 : index
    %c0_63 = arith.constant 0 : index
    %63 = vector.load %arg11[%c0_61, %c0_62, %c0_63] : memref<1x128x8xf32, #tpu.memory_space<vmem>>, vector<1x128x8xf32>
    %64 = vector.shape_cast %63 : vector<1x128x8xf32> to vector<128x8xf32>
    %65 = arith.truncf %64 : vector<128x8xf32> to vector<128x8xbf16>
    %c0_64 = arith.constant 0 : index
    %c0_65 = arith.constant 0 : index
    %c2 = arith.constant 2 : index
    %c0_66 = arith.constant 0 : index
    %c0_67 = arith.constant 0 : index
    %66 = vector.load %arg13[%c0_64, %c0_65, %c2, %c0_66, %c0_67] : memref<1x1x8x8x8xf32, #tpu.memory_space<vmem>>, vector<1x1x1x8x8xf32>
    %67 = vector.shape_cast %66 : vector<1x1x1x8x8xf32> to vector<8x8xf32>
    %cst_68 = arith.constant dense<0.000000e+00> : vector<8x8xf32>
    %68 = tpu.matmul %11, %62, %cst_68 {dimension_numbers = #tpu.dot_dimension_numbers<[1], [0], [0], [1], [0, 0, 1, 1], [], []>} : vector<8x128xbf16>, vector<128x8xbf16>, vector<8x8xf32> -> vector<8x8xf32>
    %69 = arith.addf %67, %68 : vector<8x8xf32>
    %c0_69 = arith.constant 0 : index
    %c0_70 = arith.constant 0 : index
    %c2_71 = arith.constant 2 : index
    %c0_72 = arith.constant 0 : index
    %c0_73 = arith.constant 0 : index
    %70 = vector.load %arg13[%c0_69, %c0_70, %c2_71, %c0_72, %c0_73] : memref<1x1x8x8x8xf32, #tpu.memory_space<vmem>>, vector<1x1x1x8x8xf32>
    %71 = vector.shape_cast %70 : vector<1x1x1x8x8xf32> to vector<8x8xf32>
    %72 = vector.shape_cast %69 : vector<8x8xf32> to vector<1x1x1x8x8xf32>
    tpu.vector_store %arg13[%c0_69, %c0_70, %c2_71, %c0_72, %c0_73], %72 {strides = array<i32>} : memref<1x1x8x8x8xf32, #tpu.memory_space<vmem>>, vector<1x1x1x8x8xf32>,
    %c0_74 = arith.constant 0 : index
    %c0_75 = arith.constant 0 : index
    %c6 = arith.constant 6 : index
    %c0_76 = arith.constant 0 : index
    %c0_77 = arith.constant 0 : index
    %73 = vector.load %arg13[%c0_74, %c0_75, %c6, %c0_76, %c0_77] : memref<1x1x8x8x8xf32, #tpu.memory_space<vmem>>, vector<1x1x1x8x8xf32>
    %74 = vector.shape_cast %73 : vector<1x1x1x8x8xf32> to vector<8x8xf32>
    %cst_78 = arith.constant dense<0.000000e+00> : vector<8x8xf32>
    %75 = tpu.matmul %19, %65, %cst_78 {dimension_numbers = #tpu.dot_dimension_numbers<[1], [0], [0], [1], [0, 0, 1, 1], [], []>} : vector<8x128xbf16>, vector<128x8xbf16>, vector<8x8xf32> -> vector<8x8xf32>
    %76 = arith.addf %74, %75 : vector<8x8xf32>
    %c0_79 = arith.constant 0 : index
    %c0_80 = arith.constant 0 : index
    %c6_81 = arith.constant 6 : index
    %c0_82 = arith.constant 0 : index
    %c0_83 = arith.constant 0 : index
    %77 = vector.load %arg13[%c0_79, %c0_80, %c6_81, %c0_82, %c0_83] : memref<1x1x8x8x8xf32, #tpu.memory_space<vmem>>, vector<1x1x1x8x8xf32>
    %78 = vector.shape_cast %77 : vector<1x1x1x8x8xf32> to vector<8x8xf32>
    %79 = vector.shape_cast %76 : vector<8x8xf32> to vector<1x1x1x8x8xf32>
    tpu.vector_store %arg13[%c0_79, %c0_80, %c6_81, %c0_82, %c0_83], %79 {strides = array<i32>} : memref<1x1x8x8x8xf32, #tpu.memory_space<vmem>>, vector<1x1x1x8x8xf32>,
    %c0_84 = arith.constant 0 : index
    %c0_85 = arith.constant 0 : index
    %c0_86 = arith.constant 0 : index
    %80 = vector.load %arg8[%c0_84, %c0_85, %c0_86] : memref<1x128x8xf32, #tpu.memory_space<vmem>>, vector<1x128x8xf32>
    %81 = vector.shape_cast %80 : vector<1x128x8xf32> to vector<128x8xf32>
    %82 = arith.truncf %81 : vector<128x8xf32> to vector<128x8xbf16>
    %c0_87 = arith.constant 0 : index
    %c0_88 = arith.constant 0 : index
    %c0_89 = arith.constant 0 : index
    %83 = vector.load %arg12[%c0_87, %c0_88, %c0_89] : memref<1x128x8xf32, #tpu.memory_space<vmem>>, vector<1x128x8xf32>
    %84 = vector.shape_cast %83 : vector<1x128x8xf32> to vector<128x8xf32>
    %85 = arith.truncf %84 : vector<128x8xf32> to vector<128x8xbf16>
    %c0_90 = arith.constant 0 : index
    %c0_91 = arith.constant 0 : index
    %c3 = arith.constant 3 : index
    %c0_92 = arith.constant 0 : index
    %c0_93 = arith.constant 0 : index
    %86 = vector.load %arg13[%c0_90, %c0_91, %c3, %c0_92, %c0_93] : memref<1x1x8x8x8xf32, #tpu.memory_space<vmem>>, vector<1x1x1x8x8xf32>
    %87 = vector.shape_cast %86 : vector<1x1x1x8x8xf32> to vector<8x8xf32>
    %cst_94 = arith.constant dense<0.000000e+00> : vector<8x8xf32>
    %88 = tpu.matmul %11, %82, %cst_94 {dimension_numbers = #tpu.dot_dimension_numbers<[1], [0], [0], [1], [0, 0, 1, 1], [], []>} : vector<8x128xbf16>, vector<128x8xbf16>, vector<8x8xf32> -> vector<8x8xf32>
    %89 = arith.addf %87, %88 : vector<8x8xf32>
    %c0_95 = arith.constant 0 : index
    %c0_96 = arith.constant 0 : index
    %c3_97 = arith.constant 3 : index
    %c0_98 = arith.constant 0 : index
    %c0_99 = arith.constant 0 : index
    %90 = vector.load %arg13[%c0_95, %c0_96, %c3_97, %c0_98, %c0_99] : memref<1x1x8x8x8xf32, #tpu.memory_space<vmem>>, vector<1x1x1x8x8xf32>
    %91 = vector.shape_cast %90 : vector<1x1x1x8x8xf32> to vector<8x8xf32>
    %92 = vector.shape_cast %89 : vector<8x8xf32> to vector<1x1x1x8x8xf32>
    tpu.vector_store %arg13[%c0_95, %c0_96, %c3_97, %c0_98, %c0_99], %92 {strides = array<i32>} : memref<1x1x8x8x8xf32, #tpu.memory_space<vmem>>, vector<1x1x1x8x8xf32>,
    %c0_100 = arith.constant 0 : index
    %c0_101 = arith.constant 0 : index
    %c7 = arith.constant 7 : index
    %c0_102 = arith.constant 0 : index
    %c0_103 = arith.constant 0 : index
    %93 = vector.load %arg13[%c0_100, %c0_101, %c7, %c0_102, %c0_103] : memref<1x1x8x8x8xf32, #tpu.memory_space<vmem>>, vector<1x1x1x8x8xf32>
    %94 = vector.shape_cast %93 : vector<1x1x1x8x8xf32> to vector<8x8xf32>
    %cst_104 = arith.constant dense<0.000000e+00> : vector<8x8xf32>
    %95 = tpu.matmul %19, %85, %cst_104 {dimension_numbers = #tpu.dot_dimension_numbers<[1], [0], [0], [1], [0, 0, 1, 1], [], []>} : vector<8x128xbf16>, vector<128x8xbf16>, vector<8x8xf32> -> vector<8x8xf32>
    %96 = arith.addf %94, %95 : vector<8x8xf32>
    %c0_105 = arith.constant 0 : index
    %c0_106 = arith.constant 0 : index
    %c7_107 = arith.constant 7 : index
    %c0_108 = arith.constant 0 : index
    %c0_109 = arith.constant 0 : index
    %97 = vector.load %arg13[%c0_105, %c0_106, %c7_107, %c0_108, %c0_109] : memref<1x1x8x8x8xf32, #tpu.memory_space<vmem>>, vector<1x1x1x8x8xf32>
    %98 = vector.shape_cast %97 : vector<1x1x1x8x8xf32> to vector<8x8xf32>
    %99 = vector.shape_cast %96 : vector<8x8xf32> to vector<1x1x1x8x8xf32>
    tpu.vector_store %arg13[%c0_105, %c0_106, %c7_107, %c0_108, %c0_109], %99 {strides = array<i32>} : memref<1x1x8x8x8xf32, #tpu.memory_space<vmem>>, vector<1x1x1x8x8xf32>,
    return
  }
  func.func @transform_0(%arg0: i32, %arg1: i32, %arg2: i32) -> (i32, i32, i32) {
    %c2_i32 = arith.constant 2 : i32
    %0 = arith.muli %arg1, %c2_i32 : i32
    %1 = arith.addi %0, %arg2 : i32
    %c0_i32 = arith.constant 0 : i32
    %c0_i32_0 = arith.constant 0 : i32
    return %arg0, %c0_i32, %1 : i32, i32, i32
  }
  func.func @transform_1(%arg0: i32, %arg1: i32, %arg2: i32) -> (i32, i32, i32) {
    %c2_i32 = arith.constant 2 : i32
    %0 = arith.muli %arg1, %c2_i32 : i32
    %1 = arith.addi %0, %arg2 : i32
    %c0_i32 = arith.constant 0 : i32
    %c0_i32_0 = arith.constant 0 : i32
    return %arg0, %c0_i32, %1 : i32, i32, i32
  }
  func.func @transform_2(%arg0: i32, %arg1: i32, %arg2: i32) -> (i32, i32, i32) {
    %c2_i32 = arith.constant 2 : i32
    %0 = arith.muli %arg1, %c2_i32 : i32
    %1 = arith.addi %0, %arg2 : i32
    %c0_i32 = arith.constant 0 : i32
    %c0_i32_0 = arith.constant 0 : i32
    return %arg0, %1, %c0_i32 : i32, i32, i32
  }
  func.func @transform_3(%arg0: i32, %arg1: i32, %arg2: i32) -> (i32, i32, i32) {
    %c2_i32 = arith.constant 2 : i32
    %0 = arith.muli %arg1, %c2_i32 : i32
    %1 = arith.addi %0, %arg2 : i32
    %c0_i32 = arith.constant 0 : i32
    %c0_i32_0 = arith.constant 0 : i32
    return %arg0, %1, %c0_i32 : i32, i32, i32
  }
  func.func @transform_4(%arg0: i32, %arg1: i32, %arg2: i32) -> (i32, i32, i32) {
    %c2_i32 = arith.constant 2 : i32
    %0 = arith.muli %arg1, %c2_i32 : i32
    %1 = arith.addi %0, %arg2 : i32
    %c0_i32 = arith.constant 0 : i32
    %c0_i32_0 = arith.constant 0 : i32
    return %arg0, %1, %c0_i32 : i32, i32, i32
  }
  func.func @transform_5(%arg0: i32, %arg1: i32, %arg2: i32) -> (i32, i32, i32) {
    %c2_i32 = arith.constant 2 : i32
    %0 = arith.muli %arg1, %c2_i32 : i32
    %1 = arith.addi %0, %arg2 : i32
    %c0_i32 = arith.constant 0 : i32
    %c0_i32_0 = arith.constant 0 : i32
    return %arg0, %1, %c0_i32 : i32, i32, i32
  }
  func.func @transform_6(%arg0: i32, %arg1: i32, %arg2: i32) -> (i32, i32, i32) {
    %c2_i32 = arith.constant 2 : i32
    %0 = arith.muli %arg1, %c2_i32 : i32
    %1 = arith.addi %0, %arg2 : i32
    %c0_i32 = arith.constant 0 : i32
    %c0_i32_0 = arith.constant 0 : i32
    return %arg0, %1, %c0_i32 : i32, i32, i32
  }
  func.func @transform_7(%arg0: i32, %arg1: i32, %arg2: i32) -> (i32, i32, i32) {
    %c2_i32 = arith.constant 2 : i32
    %0 = arith.muli %arg1, %c2_i32 : i32
    %1 = arith.addi %0, %arg2 : i32
    %c0_i32 = arith.constant 0 : i32
    %c0_i32_0 = arith.constant 0 : i32
    return %arg0, %1, %c0_i32 : i32, i32, i32
  }
  func.func @transform_8(%arg0: i32, %arg1: i32, %arg2: i32) -> (i32, i32, i32) {
    %c2_i32 = arith.constant 2 : i32
    %0 = arith.muli %arg1, %c2_i32 : i32
    %1 = arith.addi %0, %arg2 : i32
    %c0_i32 = arith.constant 0 : i32
    %c0_i32_0 = arith.constant 0 : i32
    return %arg0, %1, %c0_i32 : i32, i32, i32
  }
  func.func @transform_9(%arg0: i32, %arg1: i32, %arg2: i32) -> (i32, i32, i32) {
    %c2_i32 = arith.constant 2 : i32
    %0 = arith.muli %arg1, %c2_i32 : i32
    %1 = arith.addi %0, %arg2 : i32
    %c0_i32 = arith.constant 0 : i32
    %c0_i32_0 = arith.constant 0 : i32
    return %arg0, %1, %c0_i32 : i32, i32, i32
  }
  func.func @transform_10(%arg0: i32, %arg1: i32, %arg2: i32) -> (i32, i32, i32, i32, i32) {
    %c0_i32 = arith.constant 0 : i32
    %c0_i32_0 = arith.constant 0 : i32
    %c0_i32_1 = arith.constant 0 : i32
    %c0_i32_2 = arith.constant 0 : i32
    return %arg0, %arg1, %c0_i32, %c0_i32_0, %c0_i32_1 : i32, i32, i32, i32, i32
  }
}

</mosaic_0001>

<llo_original>
// kernel: tpu_custom_call.1
$region0: #{tpu_custom_call.1}
  #allocation0 [shape = 'u32[]', space=smem, size = 0x4, offset = 0x4, fixed_abs, tag = 'smem constant byte address 0x4 - core index']
  #allocation1 [shape = 'u32[72,128]{1,0:T(1,128)}', space=vmem, size = 0x9000, scoped, tag = 'internal scratch']
  %s0 = inlined_call_operand.vmem [shape: s32[2,1,512], index: 0, kind: input, shape index: {}]
  %s1 = inlined_call_operand.vmem [shape: s32[2,1,512], index: 1, kind: input, shape index: {}]
  %s2 = inlined_call_operand.vmem [shape: f32[2,512,8], index: 2, kind: input, shape index: {}]
  %s3 = inlined_call_operand.vmem [shape: f32[2,512,8], index: 3, kind: input, shape index: {}]
  %s4 = inlined_call_operand.vmem [shape: f32[2,512,8], index: 4, kind: input, shape index: {}]
  %s5 = inlined_call_operand.vmem [shape: f32[2,512,8], index: 5, kind: input, shape index: {}]
  %s6 = inlined_call_operand.vmem [shape: f32[2,512,8], index: 6, kind: input, shape index: {}]
  %s7 = inlined_call_operand.vmem [shape: f32[2,512,8], index: 7, kind: input, shape index: {}]
  %s8 = inlined_call_operand.vmem [shape: f32[2,512,8], index: 8, kind: input, shape index: {}]
  %s9 = inlined_call_operand.vmem [shape: f32[2,512,8], index: 9, kind: input, shape index: {}]
  %s10 = inlined_call_operand.hbm [shape: f32[2,2,8,8,8], index: 10, kind: output, shape index: {}]
  %s11 = sld [smem:[#allocation0]]
  $region77: #{tpu_custom_call.1} parent=0
    _
  %s13 = ssub.s32 1, %s11
  %s14 = scalar_select 0, %s13, %s11
  $region1: #{tpu_custom_call.1} parent=0
    #allocation2 [shape = 'u8[65536]{0}', space=vmem, size = 0x10000, scoped, tag = 'output window, operand 0']
    #allocation3 [shape = 's32[2]{0}', space=sflag, size = 0x8, scoped, tag = 'scoped memory for tpu_custom_call.1']
    %15 = vsyncpa [#allocation3], 0
    %s16 = scalar_lea.sflag [#allocation3], 1
    %17 = vsyncpa %s16, 0
    loop: start=0, step=1, limit=10
    $region2: #{tpu_custom_call.1} parent=1 // loop_pre_header
      _
    $region3: #{tpu_custom_call.1} parent=1 // loop_header
      %s19 = sphi 0, %s23
      %p20 = scmp.ge.s32.totalorder %s19, 10
      %s26 = sphi 0, %s45
      %s27 = sphi 0, %s41
      %s28 = sphi 0, %s37
      %s29 = sphi 0, %s26
      %s30 = sphi 0, %s27
      %s31 = sphi 0, %s28
      %s32 = sphi 0, %s29
      %s33 = sphi 0, %s30
      %s34 = sphi 0, %s31
      %s54 = sphi 0, %s56
      %s57 = sphi 0, %s54
      %s58 = sphi 0, %s57
      %s74 = sphi 0, %s58
      %s86 = sphi 0, %s88
      %s89 = sphi 0, %s86
      %s90 = sphi 0, %s89
      %s106 = sphi 0, %s90
      %s118 = sphi 0, %s120
      %s121 = sphi 0, %s118
      %s122 = sphi 0, %s121
      %s138 = sphi 0, %s122
      %s150 = sphi 0, %s152
      %s153 = sphi 0, %s150
      %s154 = sphi 0, %s153
      %s170 = sphi 0, %s154
      %s182 = sphi 0, %s184
      %s185 = sphi 0, %s182
      %s186 = sphi 0, %s185
      %s202 = sphi 0, %s186
      %s214 = sphi 0, %s216
      %s217 = sphi 0, %s214
      %s218 = sphi 0, %s217
      %s234 = sphi 0, %s218
      %s246 = sphi 0, %s248
      %s249 = sphi 0, %s246
      %s250 = sphi 0, %s249
      %s266 = sphi 0, %s250
      %s278 = sphi 0, %s280
      %s281 = sphi 0, %s278
      %s282 = sphi 0, %s281
      %s298 = sphi 0, %s282
      %s310 = sphi 0, %s312
      %s313 = sphi 0, %s310
      %s314 = sphi 0, %s313
      %s330 = sphi 0, %s314
      %s342 = sphi 0, %s344
      %s345 = sphi 0, %s342
      %s346 = sphi 0, %s345
      %s362 = sphi 0, %s346
      %s370 = sphi 0, %s372
      %s373 = sphi 0, %s370
      %s374 = sphi 0, %s373
      %s390 = sphi 0, %s374
    $region4: #{tpu_custom_call.1} parent=1 // loop_header_branch
      %22 = sbr.rel (%p20) target = $region8
    $region5: #{tpu_custom_call.1} parent=1 // loop_body
      %s24 = ssub.s32 %s19, 1
      %s25 = ssub.s32 %s19, 2
      %s35 = sadd.s32 1, %s28
      %p36 = scmp.ge.s32.totalorder %s35, 2
      %s37 = scalar_select %p36, 0, %s35
      %s38 = sadd.s32 1, %s27
      %s39 = scalar_select %p36, %s38, %s27
      %p40 = scmp.ge.s32.totalorder %s39, 2
      %s41 = scalar_select %p40, 0, %s39
      %s42 = sadd.s32 1, %s26
      %s43 = scalar_select %p40, %s42, %s26
      %p44 = scmp.ge.s32.totalorder %s43, 2
      %s45 = scalar_select %p44, 0, %s43
      %s46 = smul.u32 %s27, 2
      %s47 = sadd.s32 %s46, %s28
      %s48 = smul.u32 %s41, 2
      %s49 = sadd.s32 %s48, %s37
      %s50 = ssub.s32 %s26, %s45
      %s51 = ssub.s32 %s47, %s49
      %s52 = sor.u32 %s50, %s51
      %p53 = scmp.eq.s32.totalorder %s52, 0
      %s55 = sadd.s32 %s54, 1
      %s56 = scalar_select %p53, %s54, %s55
      %p59 = pneg %p53
      %p60 = scmp.eq.s32.totalorder %s19, 7
      %p61 = por %p59, %p60
      %p62 = scmp.ne.s32.totalorder %s54, %s57
      %p63 = scmp.eq.s32.totalorder %s19, 0
      %p64 = por %p62, %p63
      %p65 = scmp.ne.s32.totalorder %s54, %s57
      %p66 = scmp.eq.s32.totalorder %s24, 7
      %p67 = por %p65, %p66
      %p68 = scmp.ne.s32.totalorder %s57, %s58
      %p69 = scmp.eq.s32.totalorder %s24, 0
      %p70 = por %p68, %p69
      %p71 = scmp.ne.s32.totalorder %s57, %s58
      %p72 = scmp.eq.s32.totalorder %s25, 7
      %p73 = por %p71, %p72
      %p75 = scmp.ne.s32.totalorder %s58, %s74
      %p76 = scmp.eq.s32.totalorder %s25, 0
      %p77 = por %p75, %p76
      %s78 = smul.u32 %s27, 2
      %s79 = sadd.s32 %s78, %s28
      %s80 = smul.u32 %s41, 2
      %s81 = sadd.s32 %s80, %s37
      %s82 = ssub.s32 %s26, %s45
      %s83 = ssub.s32 %s79, %s81
      %s84 = sor.u32 %s82, %s83
      %p85 = scmp.eq.s32.totalorder %s84, 0
      %s87 = sadd.s32 %s86, 1
      %s88 = scalar_select %p85, %s86, %s87
      %p91 = pneg %p85
      %p92 = scmp.eq.s32.totalorder %s19, 7
      %p93 = por %p91, %p92
      %p94 = scmp.ne.s32.totalorder %s86, %s89
      %p95 = scmp.eq.s32.totalorder %s19, 0
      %p96 = por %p94, %p95
      %p97 = scmp.ne.s32.totalorder %s86, %s89
      %p98 = scmp.eq.s32.totalorder %s24, 7
      %p99 = por %p97, %p98
      %p100 = scmp.ne.s32.totalorder %s89, %s90
      %p101 = scmp.eq.s32.totalorder %s24, 0
      %p102 = por %p100, %p101
      %p103 = scmp.ne.s32.totalorder %s89, %s90
      %p104 = scmp.eq.s32.totalorder %s25, 7
      %p105 = por %p103, %p104
      %p107 = scmp.ne.s32.totalorder %s90, %s106
      %p108 = scmp.eq.s32.totalorder %s25, 0
      %p109 = por %p107, %p108
      %s110 = smul.u32 %s27, 2
      %s111 = sadd.s32 %s110, %s28
      %s112 = smul.u32 %s41, 2
      %s113 = sadd.s32 %s112, %s37
      %s114 = ssub.s32 %s26, %s45
      %s115 = ssub.s32 %s111, %s113
      %s116 = sor.u32 %s114, %s115
      %p117 = scmp.eq.s32.totalorder %s116, 0
      %s119 = sadd.s32 %s118, 1
      %s120 = scalar_select %p117, %s118, %s119
      %p123 = pneg %p117
      %p124 = scmp.eq.s32.totalorder %s19, 7
      %p125 = por %p123, %p124
      %p126 = scmp.ne.s32.totalorder %s118, %s121
      %p127 = scmp.eq.s32.totalorder %s19, 0
      %p128 = por %p126, %p127
      %p129 = scmp.ne.s32.totalorder %s118, %s121
      %p130 = scmp.eq.s32.totalorder %s24, 7
      %p131 = por %p129, %p130
      %p132 = scmp.ne.s32.totalorder %s121, %s122
      %p133 = scmp.eq.s32.totalorder %s24, 0
      %p134 = por %p132, %p133
      %p135 = scmp.ne.s32.totalorder %s121, %s122
      %p136 = scmp.eq.s32.totalorder %s25, 7
      %p137 = por %p135, %p136
      %p139 = scmp.ne.s32.totalorder %s122, %s138
      %p140 = scmp.eq.s32.totalorder %s25, 0
      %p141 = por %p139, %p140
      %s142 = smul.u32 %s27, 2
      %s143 = sadd.s32 %s142, %s28
      %s144 = smul.u32 %s41, 2
      %s145 = sadd.s32 %s144, %s37
      %s146 = ssub.s32 %s26, %s45
      %s147 = ssub.s32 %s143, %s145
      %s148 = sor.u32 %s146, %s147
      %p149 = scmp.eq.s32.totalorder %s148, 0
      %s151 = sadd.s32 %s150, 1
      %s152 = scalar_select %p149, %s150, %s151
      %p155 = pneg %p149
      %p156 = scmp.eq.s32.totalorder %s19, 7
      %p157 = por %p155, %p156
      %p158 = scmp.ne.s32.totalorder %s150, %s153
      %p159 = scmp.eq.s32.totalorder %s19, 0
      %p160 = por %p158, %p159
      %p161 = scmp.ne.s32.totalorder %s150, %s153
      %p162 = scmp.eq.s32.totalorder %s24, 7
      %p163 = por %p161, %p162
      %p164 = scmp.ne.s32.totalorder %s153, %s154
      %p165 = scmp.eq.s32.totalorder %s24, 0
      %p166 = por %p164, %p165
      %p167 = scmp.ne.s32.totalorder %s153, %s154
      %p168 = scmp.eq.s32.totalorder %s25, 7
      %p169 = por %p167, %p168
      %p171 = scmp.ne.s32.totalorder %s154, %s170
      %p172 = scmp.eq.s32.totalorder %s25, 0
      %p173 = por %p171, %p172
      %s174 = smul.u32 %s27, 2
      %s175 = sadd.s32 %s174, %s28
      %s176 = smul.u32 %s41, 2
      %s177 = sadd.s32 %s176, %s37
      %s178 = ssub.s32 %s26, %s45
      %s179 = ssub.s32 %s175, %s177
      %s180 = sor.u32 %s178, %s179
      %p181 = scmp.eq.s32.totalorder %s180, 0
      %s183 = sadd.s32 %s182, 1
      %s184 = scalar_select %p181, %s182, %s183
      %p187 = pneg %p181
      %p188 = scmp.eq.s32.totalorder %s19, 7
      %p189 = por %p187, %p188
      %p190 = scmp.ne.s32.totalorder %s182, %s185
      %p191 = scmp.eq.s32.totalorder %s19, 0
      %p192 = por %p190, %p191
      %p193 = scmp.ne.s32.totalorder %s182, %s185
      %p194 = scmp.eq.s32.totalorder %s24, 7
      %p195 = por %p193, %p194
      %p196 = scmp.ne.s32.totalorder %s185, %s186
      %p197 = scmp.eq.s32.totalorder %s24, 0
      %p198 = por %p196, %p197
      %p199 = scmp.ne.s32.totalorder %s185, %s186
      %p200 = scmp.eq.s32.totalorder %s25, 7
      %p201 = por %p199, %p200
      %p203 = scmp.ne.s32.totalorder %s186, %s202
      %p204 = scmp.eq.s32.totalorder %s25, 0
      %p205 = por %p203, %p204
      %s206 = smul.u32 %s27, 2
      %s207 = sadd.s32 %s206, %s28
      %s208 = smul.u32 %s41, 2
      %s209 = sadd.s32 %s208, %s37
      %s210 = ssub.s32 %s26, %s45
      %s211 = ssub.s32 %s207, %s209
      %s212 = sor.u32 %s210, %s211
      %p213 = scmp.eq.s32.totalorder %s212, 0
      %s215 = sadd.s32 %s214, 1
      %s216 = scalar_select %p213, %s214, %s215
      %p219 = pneg %p213
      %p220 = scmp.eq.s32.totalorder %s19, 7
      %p221 = por %p219, %p220
      %p222 = scmp.ne.s32.totalorder %s214, %s217
      %p223 = scmp.eq.s32.totalorder %s19, 0
      %p224 = por %p222, %p223
      %p225 = scmp.ne.s32.totalorder %s214, %s217
      %p226 = scmp.eq.s32.totalorder %s24, 7
      %p227 = por %p225, %p226
      %p228 = scmp.ne.s32.totalorder %s217, %s218
      %p229 = scmp.eq.s32.totalorder %s24, 0
      %p230 = por %p228, %p229
      %p231 = scmp.ne.s32.totalorder %s217, %s218
      %p232 = scmp.eq.s32.totalorder %s25, 7
      %p233 = por %p231, %p232
      %p235 = scmp.ne.s32.totalorder %s218, %s234
      %p236 = scmp.eq.s32.totalorder %s25, 0
      %p237 = por %p235, %p236
      %s238 = smul.u32 %s27, 2
      %s239 = sadd.s32 %s238, %s28
      %s240 = smul.u32 %s41, 2
      %s241 = sadd.s32 %s240, %s37
      %s242 = ssub.s32 %s26, %s45
      %s243 = ssub.s32 %s239, %s241
      %s244 = sor.u32 %s242, %s243
      %p245 = scmp.eq.s32.totalorder %s244, 0
      %s247 = sadd.s32 %s246, 1
      %s248 = scalar_select %p245, %s246, %s247
      %p251 = pneg %p245
      %p252 = scmp.eq.s32.totalorder %s19, 7
      %p253 = por %p251, %p252
      %p254 = scmp.ne.s32.totalorder %s246, %s249
      %p255 = scmp.eq.s32.totalorder %s19, 0
      %p256 = por %p254, %p255
      %p257 = scmp.ne.s32.totalorder %s246, %s249
      %p258 = scmp.eq.s32.totalorder %s24, 7
      %p259 = por %p257, %p258
      %p260 = scmp.ne.s32.totalorder %s249, %s250
      %p261 = scmp.eq.s32.totalorder %s24, 0
      %p262 = por %p260, %p261
      %p263 = scmp.ne.s32.totalorder %s249, %s250
      %p264 = scmp.eq.s32.totalorder %s25, 7
      %p265 = por %p263, %p264
      %p267 = scmp.ne.s32.totalorder %s250, %s266
      %p268 = scmp.eq.s32.totalorder %s25, 0
      %p269 = por %p267, %p268
      %s270 = smul.u32 %s27, 2
      %s271 = sadd.s32 %s270, %s28
      %s272 = smul.u32 %s41, 2
      %s273 = sadd.s32 %s272, %s37
      %s274 = ssub.s32 %s26, %s45
      %s275 = ssub.s32 %s271, %s273
      %s276 = sor.u32 %s274, %s275
      %p277 = scmp.eq.s32.totalorder %s276, 0
      %s279 = sadd.s32 %s278, 1
      %s280 = scalar_select %p277, %s278, %s279
      %p283 = pneg %p277
      %p284 = scmp.eq.s32.totalorder %s19, 7
      %p285 = por %p283, %p284
      %p286 = scmp.ne.s32.totalorder %s278, %s281
      %p287 = scmp.eq.s32.totalorder %s19, 0
      %p288 = por %p286, %p287
      %p289 = scmp.ne.s32.totalorder %s278, %s281
      %p290 = scmp.eq.s32.totalorder %s24, 7
      %p291 = por %p289, %p290
      %p292 = scmp.ne.s32.totalorder %s281, %s282
      %p293 = scmp.eq.s32.totalorder %s24, 0
      %p294 = por %p292, %p293
      %p295 = scmp.ne.s32.totalorder %s281, %s282
      %p296 = scmp.eq.s32.totalorder %s25, 7
      %p297 = por %p295, %p296
      %p299 = scmp.ne.s32.totalorder %s282, %s298
      %p300 = scmp.eq.s32.totalorder %s25, 0
      %p301 = por %p299, %p300
      %s302 = smul.u32 %s27, 2
      %s303 = sadd.s32 %s302, %s28
      %s304 = smul.u32 %s41, 2
      %s305 = sadd.s32 %s304, %s37
      %s306 = ssub.s32 %s26, %s45
      %s307 = ssub.s32 %s303, %s305
      %s308 = sor.u32 %s306, %s307
      %p309 = scmp.eq.s32.totalorder %s308, 0
      %s311 = sadd.s32 %s310, 1
      %s312 = scalar_select %p309, %s310, %s311
      %p315 = pneg %p309
      %p316 = scmp.eq.s32.totalorder %s19, 7
      %p317 = por %p315, %p316
      %p318 = scmp.ne.s32.totalorder %s310, %s313
      %p319 = scmp.eq.s32.totalorder %s19, 0
      %p320 = por %p318, %p319
      %p321 = scmp.ne.s32.totalorder %s310, %s313
      %p322 = scmp.eq.s32.totalorder %s24, 7
      %p323 = por %p321, %p322
      %p324 = scmp.ne.s32.totalorder %s313, %s314
      %p325 = scmp.eq.s32.totalorder %s24, 0
      %p326 = por %p324, %p325
      %p327 = scmp.ne.s32.totalorder %s313, %s314
      %p328 = scmp.eq.s32.totalorder %s25, 7
      %p329 = por %p327, %p328
      %p331 = scmp.ne.s32.totalorder %s314, %s330
      %p332 = scmp.eq.s32.totalorder %s25, 0
      %p333 = por %p331, %p332
      %s334 = smul.u32 %s27, 2
      %s335 = sadd.s32 %s334, %s28
      %s336 = smul.u32 %s41, 2
      %s337 = sadd.s32 %s336, %s37
      %s338 = ssub.s32 %s26, %s45
      %s339 = ssub.s32 %s335, %s337
      %s340 = sor.u32 %s338, %s339
      %p341 = scmp.eq.s32.totalorder %s340, 0
      %s343 = sadd.s32 %s342, 1
      %s344 = scalar_select %p341, %s342, %s343
      %p347 = pneg %p341
      %p348 = scmp.eq.s32.totalorder %s19, 7
      %p349 = por %p347, %p348
      %p350 = scmp.ne.s32.totalorder %s342, %s345
      %p351 = scmp.eq.s32.totalorder %s19, 0
      %p352 = por %p350, %p351
      %p353 = scmp.ne.s32.totalorder %s342, %s345
      %p354 = scmp.eq.s32.totalorder %s24, 7
      %p355 = por %p353, %p354
      %p356 = scmp.ne.s32.totalorder %s345, %s346
      %p357 = scmp.eq.s32.totalorder %s24, 0
      %p358 = por %p356, %p357
      %p359 = scmp.ne.s32.totalorder %s345, %s346
      %p360 = scmp.eq.s32.totalorder %s25, 7
      %p361 = por %p359, %p360
      %p363 = scmp.ne.s32.totalorder %s346, %s362
      %p364 = scmp.eq.s32.totalorder %s25, 0
      %p365 = por %p363, %p364
      %s366 = ssub.s32 %s26, %s45
      %s367 = ssub.s32 %s27, %s41
      %s368 = sor.u32 %s366, %s367
      %p369 = scmp.eq.s32.totalorder %s368, 0
      %s371 = sadd.s32 %s370, 1
      %s372 = scalar_select %p369, %s370, %s371
      %p375 = pneg %p369
      %p376 = scmp.eq.s32.totalorder %s19, 7
      %p377 = por %p375, %p376
      %p378 = scmp.ne.s32.totalorder %s370, %s373
      %p379 = scmp.eq.s32.totalorder %s19, 0
      %p380 = por %p378, %p379
      %p381 = scmp.ne.s32.totalorder %s370, %s373
      %p382 = scmp.eq.s32.totalorder %s24, 7
      %p383 = por %p381, %p382
      %p384 = scmp.ne.s32.totalorder %s373, %s374
      %p385 = scmp.eq.s32.totalorder %s24, 0
      %p386 = por %p384, %p385
      %p387 = scmp.ne.s32.totalorder %s373, %s374
      %p388 = scmp.eq.s32.totalorder %s25, 7
      %p389 = por %p387, %p388
      %p391 = scmp.ne.s32.totalorder %s374, %s390
      %p392 = scmp.eq.s32.totalorder %s25, 0
      %p393 = por %p391, %p392
      %p394 = scmp.le.s32.totalorder 1, %s19
      %p395 = scmp.lt.s32.totalorder %s19, 9
      %p396 = pnand %p394, %p395
      %p397 = pneg %p396
      // Predicated region
      $region9: #{tpu_custom_call.1} parent=5 // pred_check
        _
      $region10: #{tpu_custom_call.1} parent=5 // pred_check_branch
        %399 = sbr.rel (%p396) target = $region12
      $region11: #{tpu_custom_call.1} parent=5 // pred_region
        %s400 = ssub.s32 %s19, 1
      $region12: #{tpu_custom_call.1} parent=5 // pred_fallthru
        _
      %p401 = scmp.lt.s32.totalorder %s19, 8
      // Predicated region
      $region13: #{tpu_custom_call.1} parent=5 // pred_check
        %p402 = pneg %p401
      $region14: #{tpu_custom_call.1} parent=5 // pred_check_branch
        %404 = sbr.rel (%p402) target = $region16
      $region15: #{tpu_custom_call.1} parent=5 // pred_region
        // Predicated region
        $region17: #{tpu_custom_call.1} parent=15 // pred_check
          %p405 = pneg %p64
        $region18: #{tpu_custom_call.1} parent=15 // pred_check_branch
          %407 = sbr.rel (%p405) target = $region20
        $region19: #{tpu_custom_call.1} parent=15 // pred_region
          %s408 = smul.u32 %s27, 2
          %s409 = sadd.s32 %s408, %s28
          %p410 = scmp.lt.s32.totalorder %s26, 1
          %s411 = scalar_select %p410, %s26, 1
          %p412 = scmp.lt.s32.totalorder %s409, 3
          %s413 = scalar_select %p412, %s409, 3
          %s414 = smul.addr %s411, 4
          %s415 = sadd.s32 %s413, %s414
          %s416 = scalar_lea.vmem %s0, %s415
          %s417 = smul.u32 %s27, 2
          %s418 = sadd.s32 %s417, %s28
        $region20: #{tpu_custom_call.1} parent=15 // pred_fallthru
          _
        // Predicated region
        $region21: #{tpu_custom_call.1} parent=15 // pred_check
          %p419 = pneg %p96
        $region22: #{tpu_custom_call.1} parent=15 // pred_check_branch
          %421 = sbr.rel (%p419) target = $region24
        $region23: #{tpu_custom_call.1} parent=15 // pred_region
          %s422 = smul.u32 %s27, 2
          %s423 = sadd.s32 %s422, %s28
          %p424 = scmp.lt.s32.totalorder %s26, 1
          %s425 = scalar_select %p424, %s26, 1
          %p426 = scmp.lt.s32.totalorder %s423, 3
          %s427 = scalar_select %p426, %s423, 3
          %s428 = smul.addr %s425, 4
          %s429 = sadd.s32 %s427, %s428
          %s430 = scalar_lea.vmem %s1, %s429
          %s431 = smul.u32 %s27, 2
          %s432 = sadd.s32 %s431, %s28
        $region24: #{tpu_custom_call.1} parent=15 // pred_fallthru
          _
        // Predicated region
        $region25: #{tpu_custom_call.1} parent=15 // pred_check
          %p433 = pneg %p128
        $region26: #{tpu_custom_call.1} parent=15 // pred_check_branch
          %435 = sbr.rel (%p433) target = $region28
        $region27: #{tpu_custom_call.1} parent=15 // pred_region
          %s436 = smul.u32 %s27, 2
          %s437 = sadd.s32 %s436, %s28
          %s438 = smul.u32 16, %s437
          %p439 = scmp.lt.s32.totalorder %s26, 1
          %s440 = scalar_select %p439, %s26, 1
          %p441 = scmp.lt.s32.totalorder %s438, 63
          %s442 = scalar_select %p441, %s438, 63
          %s443 = smul.addr %s440, 64
          %s444 = sadd.s32 %s442, %s443
          %s445 = smul.addr %s444, 8
          %s446 = scalar_lea.vmem %s2, %s445
          %s447 = smul.u32 %s27, 2
          %s448 = sadd.s32 %s447, %s28
          %s449 = smul.u32 16, %s448
        $region28: #{tpu_custom_call.1} parent=15 // pred_fallthru
          _
        // Predicated region
        $region29: #{tpu_custom_call.1} parent=15 // pred_check
          %p450 = pneg %p160
        $region30: #{tpu_custom_call.1} parent=15 // pred_check_branch
          %452 = sbr.rel (%p450) target = $region32
        $region31: #{tpu_custom_call.1} parent=15 // pred_region
          %s453 = smul.u32 %s27, 2
          %s454 = sadd.s32 %s453, %s28
          %s455 = smul.u32 16, %s454
          %p456 = scmp.lt.s32.totalorder %s26, 1
          %s457 = scalar_select %p456, %s26, 1
          %p458 = scmp.lt.s32.totalorder %s455, 63
          %s459 = scalar_select %p458, %s455, 63
          %s460 = smul.addr %s457, 64
          %s461 = sadd.s32 %s459, %s460
          %s462 = smul.addr %s461, 8
          %s463 = scalar_lea.vmem %s3, %s462
          %s464 = smul.u32 %s27, 2
          %s465 = sadd.s32 %s464, %s28
          %s466 = smul.u32 16, %s465
        $region32: #{tpu_custom_call.1} parent=15 // pred_fallthru
          _
        // Predicated region
        $region33: #{tpu_custom_call.1} parent=15 // pred_check
          %p467 = pneg %p192
        $region34: #{tpu_custom_call.1} parent=15 // pred_check_branch
          %469 = sbr.rel (%p467) target = $region36
        $region35: #{tpu_custom_call.1} parent=15 // pred_region
          %s470 = smul.u32 %s27, 2
          %s471 = sadd.s32 %s470, %s28
          %s472 = smul.u32 16, %s471
          %p473 = scmp.lt.s32.totalorder %s26, 1
          %s474 = scalar_select %p473, %s26, 1
          %p475 = scmp.lt.s32.totalorder %s472, 63
          %s476 = scalar_select %p475, %s472, 63
          %s477 = smul.addr %s474, 64
          %s478 = sadd.s32 %s476, %s477
          %s479 = smul.addr %s478, 8
          %s480 = scalar_lea.vmem %s4, %s479
          %s481 = smul.u32 %s27, 2
          %s482 = sadd.s32 %s481, %s28
          %s483 = smul.u32 16, %s482
        $region36: #{tpu_custom_call.1} parent=15 // pred_fallthru
          _
        // Predicated region
        $region37: #{tpu_custom_call.1} parent=15 // pred_check
          %p484 = pneg %p224
        $region38: #{tpu_custom_call.1} parent=15 // pred_check_branch
          %486 = sbr.rel (%p484) target = $region40
        $region39: #{tpu_custom_call.1} parent=15 // pred_region
          %s487 = smul.u32 %s27, 2
          %s488 = sadd.s32 %s487, %s28
          %s489 = smul.u32 16, %s488
          %p490 = scmp.lt.s32.totalorder %s26, 1
          %s491 = scalar_select %p490, %s26, 1
          %p492 = scmp.lt.s32.totalorder %s489, 63
          %s493 = scalar_select %p492, %s489, 63
          %s494 = smul.addr %s491, 64
          %s495 = sadd.s32 %s493, %s494
          %s496 = smul.addr %s495, 8
          %s497 = scalar_lea.vmem %s5, %s496
          %s498 = smul.u32 %s27, 2
          %s499 = sadd.s32 %s498, %s28
          %s500 = smul.u32 16, %s499
        $region40: #{tpu_custom_call.1} parent=15 // pred_fallthru
          _
        // Predicated region
        $region41: #{tpu_custom_call.1} parent=15 // pred_check
          %p501 = pneg %p256
        $region42: #{tpu_custom_call.1} parent=15 // pred_check_branch
          %503 = sbr.rel (%p501) target = $region44
        $region43: #{tpu_custom_call.1} parent=15 // pred_region
          %s504 = smul.u32 %s27, 2
          %s505 = sadd.s32 %s504, %s28
          %s506 = smul.u32 16, %s505
          %p507 = scmp.lt.s32.totalorder %s26, 1
          %s508 = scalar_select %p507, %s26, 1
          %p509 = scmp.lt.s32.totalorder %s506, 63
          %s510 = scalar_select %p509, %s506, 63
          %s511 = smul.addr %s508, 64
          %s512 = sadd.s32 %s510, %s511
          %s513 = smul.addr %s512, 8
          %s514 = scalar_lea.vmem %s6, %s513
          %s515 = smul.u32 %s27, 2
          %s516 = sadd.s32 %s515, %s28
          %s517 = smul.u32 16, %s516
        $region44: #{tpu_custom_call.1} parent=15 // pred_fallthru
          _
        // Predicated region
        $region45: #{tpu_custom_call.1} parent=15 // pred_check
          %p518 = pneg %p288
        $region46: #{tpu_custom_call.1} parent=15 // pred_check_branch
          %520 = sbr.rel (%p518) target = $region48
        $region47: #{tpu_custom_call.1} parent=15 // pred_region
          %s521 = smul.u32 %s27, 2
          %s522 = sadd.s32 %s521, %s28
          %s523 = smul.u32 16, %s522
          %p524 = scmp.lt.s32.totalorder %s26, 1
          %s525 = scalar_select %p524, %s26, 1
          %p526 = scmp.lt.s32.totalorder %s523, 63
          %s527 = scalar_select %p526, %s523, 63
          %s528 = smul.addr %s525, 64
          %s529 = sadd.s32 %s527, %s528
          %s530 = smul.addr %s529, 8
          %s531 = scalar_lea.vmem %s7, %s530
          %s532 = smul.u32 %s27, 2
          %s533 = sadd.s32 %s532, %s28
          %s534 = smul.u32 16, %s533
        $region48: #{tpu_custom_call.1} parent=15 // pred_fallthru
          _
        // Predicated region
        $region49: #{tpu_custom_call.1} parent=15 // pred_check
          %p535 = pneg %p320
        $region50: #{tpu_custom_call.1} parent=15 // pred_check_branch
          %537 = sbr.rel (%p535) target = $region52
        $region51: #{tpu_custom_call.1} parent=15 // pred_region
          %s538 = smul.u32 %s27, 2
          %s539 = sadd.s32 %s538, %s28
          %s540 = smul.u32 16, %s539
          %p541 = scmp.lt.s32.totalorder %s26, 1
          %s542 = scalar_select %p541, %s26, 1
          %p543 = scmp.lt.s32.totalorder %s540, 63
          %s544 = scalar_select %p543, %s540, 63
          %s545 = smul.addr %s542, 64
          %s546 = sadd.s32 %s544, %s545
          %s547 = smul.addr %s546, 8
          %s548 = scalar_lea.vmem %s8, %s547
          %s549 = smul.u32 %s27, 2
          %s550 = sadd.s32 %s549, %s28
          %s551 = smul.u32 16, %s550
        $region52: #{tpu_custom_call.1} parent=15 // pred_fallthru
          _
        // Predicated region
        $region53: #{tpu_custom_call.1} parent=15 // pred_check
          %p552 = pneg %p352
        $region54: #{tpu_custom_call.1} parent=15 // pred_check_branch
          %554 = sbr.rel (%p552) target = $region56
        $region55: #{tpu_custom_call.1} parent=15 // pred_region
          %s555 = smul.u32 %s27, 2
          %s556 = sadd.s32 %s555, %s28
          %s557 = smul.u32 16, %s556
          %p558 = scmp.lt.s32.totalorder %s26, 1
          %s559 = scalar_select %p558, %s26, 1
          %p560 = scmp.lt.s32.totalorder %s557, 63
          %s561 = scalar_select %p560, %s557, 63
          %s562 = smul.addr %s559, 64
          %s563 = sadd.s32 %s561, %s562
          %s564 = smul.addr %s563, 8
          %s565 = scalar_lea.vmem %s9, %s564
          %s566 = smul.u32 %s27, 2
          %s567 = sadd.s32 %s566, %s28
          %s568 = smul.u32 16, %s567
        $region56: #{tpu_custom_call.1} parent=15 // pred_fallthru
          _
      $region16: #{tpu_custom_call.1} parent=5 // pred_fallthru
        _
      %p569 = scmp.le.s32.totalorder 1, %s19
      %p570 = scmp.lt.s32.totalorder %s19, 9
      %p571 = pnand %p569, %p570
      %p572 = pneg %p571
      // Predicated region
      $region57: #{tpu_custom_call.1} parent=5 // pred_check
        _
      $region58: #{tpu_custom_call.1} parent=5 // pred_check_branch
        %574 = sbr.rel (%p571) target = $region60
      $region59: #{tpu_custom_call.1} parent=5 // pred_region
        %s575 = ssub.s32 %s19, 1
        %s576 = smul.u32 %s30, 2
        %s577 = sadd.s32 %s576, %s31
        %p578 = scmp.lt.s32.totalorder %s29, 1
        %s579 = scalar_select %p578, %s29, 1
        %p580 = scmp.lt.s32.totalorder %s577, 3
        %s581 = scalar_select %p580, %s577, 3
        %s582 = smul.addr %s579, 4
        %s583 = sadd.s32 %s581, %s582
        %s584 = scalar_lea.vmem %s0, %s583
        %p585 = pneg %p70
        %p586 = pneg %p67
        %s587 = smul.u32 %s30, 2
        %s588 = sadd.s32 %s587, %s31
        %p589 = scmp.lt.s32.totalorder %s29, 1
        %s590 = scalar_select %p589, %s29, 1
        %p591 = scmp.lt.s32.totalorder %s588, 3
        %s592 = scalar_select %p591, %s588, 3
        %s593 = smul.addr %s590, 4
        %s594 = sadd.s32 %s592, %s593
        %s595 = scalar_lea.vmem %s1, %s594
        %p596 = pneg %p102
        %p597 = pneg %p99
        %s598 = smul.u32 %s30, 2
        %s599 = sadd.s32 %s598, %s31
        %s600 = smul.u32 16, %s599
        %p601 = scmp.lt.s32.totalorder %s29, 1
        %s602 = scalar_select %p601, %s29, 1
        %p603 = scmp.lt.s32.totalorder %s600, 63
        %s604 = scalar_select %p603, %s600, 63
        %s605 = smul.addr %s602, 64
        %s606 = sadd.s32 %s604, %s605
        %s607 = smul.addr %s606, 8
        %s608 = scalar_lea.vmem %s2, %s607
        %p609 = pneg %p134
        %p610 = pneg %p131
        %s611 = smul.u32 %s30, 2
        %s612 = sadd.s32 %s611, %s31
        %s613 = smul.u32 16, %s612
        %p614 = scmp.lt.s32.totalorder %s29, 1
        %s615 = scalar_select %p614, %s29, 1
        %p616 = scmp.lt.s32.totalorder %s613, 63
        %s617 = scalar_select %p616, %s613, 63
        %s618 = smul.addr %s615, 64
        %s619 = sadd.s32 %s617, %s618
        %s620 = smul.addr %s619, 8
        %s621 = scalar_lea.vmem %s3, %s620
        %p622 = pneg %p166
        %p623 = pneg %p163
        %s624 = smul.u32 %s30, 2
        %s625 = sadd.s32 %s624, %s31
        %s626 = smul.u32 16, %s625
        %p627 = scmp.lt.s32.totalorder %s29, 1
        %s628 = scalar_select %p627, %s29, 1
        %p629 = scmp.lt.s32.totalorder %s626, 63
        %s630 = scalar_select %p629, %s626, 63
        %s631 = smul.addr %s628, 64
        %s632 = sadd.s32 %s630, %s631
        %s633 = smul.addr %s632, 8
        %s634 = scalar_lea.vmem %s4, %s633
        %p635 = pneg %p198
        %p636 = pneg %p195
        %s637 = smul.u32 %s30, 2
        %s638 = sadd.s32 %s637, %s31
        %s639 = smul.u32 16, %s638
        %p640 = scmp.lt.s32.totalorder %s29, 1
        %s641 = scalar_select %p640, %s29, 1
        %p642 = scmp.lt.s32.totalorder %s639, 63
        %s643 = scalar_select %p642, %s639, 63
        %s644 = smul.addr %s641, 64
        %s645 = sadd.s32 %s643, %s644
        %s646 = smul.addr %s645, 8
        %s647 = scalar_lea.vmem %s5, %s646
        %p648 = pneg %p230
        %p649 = pneg %p227
        %s650 = smul.u32 %s30, 2
        %s651 = sadd.s32 %s650, %s31
        %s652 = smul.u32 16, %s651
        %p653 = scmp.lt.s32.totalorder %s29, 1
        %s654 = scalar_select %p653, %s29, 1
        %p655 = scmp.lt.s32.totalorder %s652, 63
        %s656 = scalar_select %p655, %s652, 63
        %s657 = smul.addr %s654, 64
        %s658 = sadd.s32 %s656, %s657
        %s659 = smul.addr %s658, 8
        %s660 = scalar_lea.vmem %s6, %s659
        %p661 = pneg %p262
        %p662 = pneg %p259
        %s663 = smul.u32 %s30, 2
        %s664 = sadd.s32 %s663, %s31
        %s665 = smul.u32 16, %s664
        %p666 = scmp.lt.s32.totalorder %s29, 1
        %s667 = scalar_select %p666, %s29, 1
        %p668 = scmp.lt.s32.totalorder %s665, 63
        %s669 = scalar_select %p668, %s665, 63
        %s670 = smul.addr %s667, 64
        %s671 = sadd.s32 %s669, %s670
        %s672 = smul.addr %s671, 8
        %s673 = scalar_lea.vmem %s7, %s672
        %p674 = pneg %p294
        %p675 = pneg %p291
        %s676 = smul.u32 %s30, 2
        %s677 = sadd.s32 %s676, %s31
        %s678 = smul.u32 16, %s677
        %p679 = scmp.lt.s32.totalorder %s29, 1
        %s680 = scalar_select %p679, %s29, 1
        %p681 = scmp.lt.s32.totalorder %s678, 63
        %s682 = scalar_select %p681, %s678, 63
        %s683 = smul.addr %s680, 64
        %s684 = sadd.s32 %s682, %s683
        %s685 = smul.addr %s684, 8
        %s686 = scalar_lea.vmem %s8, %s685
        %p687 = pneg %p326
        %p688 = pneg %p323
        %s689 = smul.u32 %s30, 2
        %s690 = sadd.s32 %s689, %s31
        %s691 = smul.u32 16, %s690
        %p692 = scmp.lt.s32.totalorder %s29, 1
        %s693 = scalar_select %p692, %s29, 1
        %p694 = scmp.lt.s32.totalorder %s691, 63
        %s695 = scalar_select %p694, %s691, 63
        %s696 = smul.addr %s693, 64
        %s697 = sadd.s32 %s695, %s696
        %s698 = smul.addr %s697, 8
        %s699 = scalar_lea.vmem %s9, %s698
        %p700 = pneg %p358
        %p701 = pneg %p355
        %p702 = pneg %p386
        %p703 = pneg %p383
        %s704 = sand.u32 %s373, 1
        %s705 = scalar_lea.sflag [#allocation3], %s704
        %s706 = sand.u32 %s373, 1
        %s707 = smul.addr %s706, 64
        %s708 = scalar_lea.vmem [#allocation2], %s707
        %s709 = smul.u32 %s30, 2
        %s710 = sadd.s32 %s709, %s31
        %p711 = scmp.lt.s32.totalorder %s29, 1
        %s712 = scalar_select %p711, %s29, 1
        %p713 = scmp.lt.s32.totalorder %s710, 3
        %s714 = scalar_select %p713, %s710, 3
        %s715 = smul.addr %s712, 4
        %s716 = sadd.s32 %s714, %s715
        %s717 = scalar_lea.vmem %s0, %s716
        %s718 = smul.u32 %s30, 2
        %s719 = sadd.s32 %s718, %s31
        %s720 = smul.u32 %s30, 2
        %s721 = sadd.s32 %s720, %s31
        %p722 = scmp.lt.s32.totalorder %s29, 1
        %s723 = scalar_select %p722, %s29, 1
        %p724 = scmp.lt.s32.totalorder %s721, 3
        %s725 = scalar_select %p724, %s721, 3
        %s726 = smul.addr %s723, 4
        %s727 = sadd.s32 %s725, %s726
        %s728 = scalar_lea.vmem %s1, %s727
        %s729 = smul.u32 %s30, 2
        %s730 = sadd.s32 %s729, %s31
        %s731 = smul.u32 %s30, 2
        %s732 = sadd.s32 %s731, %s31
        %s733 = smul.u32 16, %s732
        %p734 = scmp.lt.s32.totalorder %s29, 1
        %s735 = scalar_select %p734, %s29, 1
        %p736 = scmp.lt.s32.totalorder %s733, 63
        %s737 = scalar_select %p736, %s733, 63
        %s738 = smul.addr %s735, 64
        %s739 = sadd.s32 %s737, %s738
        %s740 = smul.addr %s739, 8
        %s741 = scalar_lea.vmem %s2, %s740
        %s742 = smul.u32 %s30, 2
        %s743 = sadd.s32 %s742, %s31
        %s744 = smul.u32 16, %s743
        %s745 = smul.u32 %s30, 2
        %s746 = sadd.s32 %s745, %s31
        %s747 = smul.u32 16, %s746
        %p748 = scmp.lt.s32.totalorder %s29, 1
        %s749 = scalar_select %p748, %s29, 1
        %p750 = scmp.lt.s32.totalorder %s747, 63
        %s751 = scalar_select %p750, %s747, 63
        %s752 = smul.addr %s749, 64
        %s753 = sadd.s32 %s751, %s752
        %s754 = smul.addr %s753, 8
        %s755 = scalar_lea.vmem %s3, %s754
        %s756 = smul.u32 %s30, 2
        %s757 = sadd.s32 %s756, %s31
        %s758 = smul.u32 16, %s757
        %s759 = smul.u32 %s30, 2
        %s760 = sadd.s32 %s759, %s31
        %s761 = smul.u32 16, %s760
        %p762 = scmp.lt.s32.totalorder %s29, 1
        %s763 = scalar_select %p762, %s29, 1
        %p764 = scmp.lt.s32.totalorder %s761, 63
        %s765 = scalar_select %p764, %s761, 63
        %s766 = smul.addr %s763, 64
        %s767 = sadd.s32 %s765, %s766
        %s768 = smul.addr %s767, 8
        %s769 = scalar_lea.vmem %s4, %s768
        %s770 = smul.u32 %s30, 2
        %s771 = sadd.s32 %s770, %s31
        %s772 = smul.u32 16, %s771
        %s773 = smul.u32 %s30, 2
        %s774 = sadd.s32 %s773, %s31
        %s775 = smul.u32 16, %s774
        %p776 = scmp.lt.s32.totalorder %s29, 1
        %s777 = scalar_select %p776, %s29, 1
        %p778 = scmp.lt.s32.totalorder %s775, 63
        %s779 = scalar_select %p778, %s775, 63
        %s780 = smul.addr %s777, 64
        %s781 = sadd.s32 %s779, %s780
        %s782 = smul.addr %s781, 8
        %s783 = scalar_lea.vmem %s5, %s782
        %s784 = smul.u32 %s30, 2
        %s785 = sadd.s32 %s784, %s31
        %s786 = smul.u32 16, %s785
        %s787 = smul.u32 %s30, 2
        %s788 = sadd.s32 %s787, %s31
        %s789 = smul.u32 16, %s788
        %p790 = scmp.lt.s32.totalorder %s29, 1
        %s791 = scalar_select %p790, %s29, 1
        %p792 = scmp.lt.s32.totalorder %s789, 63
        %s793 = scalar_select %p792, %s789, 63
        %s794 = smul.addr %s791, 64
        %s795 = sadd.s32 %s793, %s794
        %s796 = smul.addr %s795, 8
        %s797 = scalar_lea.vmem %s6, %s796
        %s798 = smul.u32 %s30, 2
        %s799 = sadd.s32 %s798, %s31
        %s800 = smul.u32 16, %s799
        %s801 = smul.u32 %s30, 2
        %s802 = sadd.s32 %s801, %s31
        %s803 = smul.u32 16, %s802
        %p804 = scmp.lt.s32.totalorder %s29, 1
        %s805 = scalar_select %p804, %s29, 1
        %p806 = scmp.lt.s32.totalorder %s803, 63
        %s807 = scalar_select %p806, %s803, 63
        %s808 = smul.addr %s805, 64
        %s809 = sadd.s32 %s807, %s808
        %s810 = smul.addr %s809, 8
        %s811 = scalar_lea.vmem %s7, %s810
        %s812 = smul.u32 %s30, 2
        %s813 = sadd.s32 %s812, %s31
        %s814 = smul.u32 16, %s813
        %s815 = smul.u32 %s30, 2
        %s816 = sadd.s32 %s815, %s31
        %s817 = smul.u32 16, %s816
        %p818 = scmp.lt.s32.totalorder %s29, 1
        %s819 = scalar_select %p818, %s29, 1
        %p820 = scmp.lt.s32.totalorder %s817, 63
        %s821 = scalar_select %p820, %s817, 63
        %s822 = smul.addr %s819, 64
        %s823 = sadd.s32 %s821, %s822
        %s824 = smul.addr %s823, 8
        %s825 = scalar_lea.vmem %s8, %s824
        %s826 = smul.u32 %s30, 2
        %s827 = sadd.s32 %s826, %s31
        %s828 = smul.u32 16, %s827
        %s829 = smul.u32 %s30, 2
        %s830 = sadd.s32 %s829, %s31
        %s831 = smul.u32 16, %s830
        %p832 = scmp.lt.s32.totalorder %s29, 1
        %s833 = scalar_select %p832, %s29, 1
        %p834 = scmp.lt.s32.totalorder %s831, 63
        %s835 = scalar_select %p834, %s831, 63
        %s836 = smul.addr %s833, 64
        %s837 = sadd.s32 %s835, %s836
        %s838 = smul.addr %s837, 8
        %s839 = scalar_lea.vmem %s9, %s838
        %s840 = smul.u32 %s30, 2
        %s841 = sadd.s32 %s840, %s31
        %s842 = smul.u32 16, %s841
        %p843 = scmp.eq.s32.totalorder %s31, 0
        // Predicated region
        $region61: #{tpu_custom_call.1} parent=59 // pred_check
          %p844 = pneg %p843
        $region62: #{tpu_custom_call.1} parent=59 // pred_check_branch
          %846 = sbr.rel (%p844) target = $region64
        $region63: #{tpu_custom_call.1} parent=59 // pred_region
          %vm847 = vcmask 64512
          %848 = vst.msk [vmem:[%s708] sm:$0xff] %vm847, 0.0
          %849 = vst.msk [vmem:[%s708 + $0x8] sm:$0xff] %vm847, 0.0
          %850 = vst.msk [vmem:[%s708 + $0x10] sm:$0xff] %vm847, 0.0
          %851 = vst.msk [vmem:[%s708 + $0x18] sm:$0xff] %vm847, 0.0
          %852 = vst.msk [vmem:[%s708 + $0x20] sm:$0xff] %vm847, 0.0
          %853 = vst.msk [vmem:[%s708 + $0x28] sm:$0xff] %vm847, 0.0
          %854 = vst.msk [vmem:[%s708 + $0x30] sm:$0xff] %vm847, 0.0
          %855 = vst.msk [vmem:[%s708 + $0x38] sm:$0xff] %vm847, 0.0
        $region64: #{tpu_custom_call.1} parent=59 // pred_fallthru
          _
        %v856 = vlaneseq
        %v857 = vshrl.u32 %v856, 7
        %v858 = vld [vmem:[%s717] sm:$0x1]
        %v859 = vperm.slane %v858, 0
        %vm860 = vcmp.eq.s32.totalorder %v859, %v857
        %v861 = vsel %vm860, 1, 0
        %v862 = vcvt.s32.f32 %v861
        %v863 = vpack.c.bf16 %v862, %v862
        %v864 = vld [vmem:[%s728] sm:$0x1]
        %v865 = vperm.slane %v864, 0
        %vm866 = vcmp.eq.s32.totalorder %v865, %v857
        %v867 = vsel %vm866, 1, 0
        %v868 = vcvt.s32.f32 %v867
        %v869 = vpack.c.bf16 %v868, %v868
        %v870 = vld [vmem:[%s741] sm:$0xff]
        %v871 = vld [vmem:[%s741 + $0x8] sm:$0xff]
        %v872 = vld [vmem:[%s741 + $0x10] sm:$0xff]
        %v873 = vld [vmem:[%s741 + $0x18] sm:$0xff]
        %v874 = vld [vmem:[%s741 + $0x20] sm:$0xff]
        %v875 = vld [vmem:[%s741 + $0x28] sm:$0xff]
        %v876 = vld [vmem:[%s741 + $0x30] sm:$0xff]
        %v877 = vld [vmem:[%s741 + $0x38] sm:$0xff]
        %v878 = vld [vmem:[%s741 + $0x40] sm:$0xff]
        %v879 = vld [vmem:[%s741 + $0x48] sm:$0xff]
        %v880 = vld [vmem:[%s741 + $0x50] sm:$0xff]
        %v881 = vld [vmem:[%s741 + $0x58] sm:$0xff]
        %v882 = vld [vmem:[%s741 + $0x60] sm:$0xff]
        %v883 = vld [vmem:[%s741 + $0x68] sm:$0xff]
        %v884 = vld [vmem:[%s741 + $0x70] sm:$0xff]
        %v885 = vld [vmem:[%s741 + $0x78] sm:$0xff]
        %v886 = vpack.c.bf16 %v871, %v870
        %v887 = vpack.c.bf16 %v873, %v872
        %v888 = vpack.c.bf16 %v875, %v874
        %v889 = vpack.c.bf16 %v877, %v876
        %v890 = vpack.c.bf16 %v879, %v878
        %v891 = vpack.c.bf16 %v881, %v880
        %v892 = vpack.c.bf16 %v883, %v882
        %v893 = vpack.c.bf16 %v885, %v884
        %v894 = vld [vmem:[%s797] sm:$0xff]
        %v895 = vld [vmem:[%s797 + $0x8] sm:$0xff]
        %v896 = vld [vmem:[%s797 + $0x10] sm:$0xff]
        %v897 = vld [vmem:[%s797 + $0x18] sm:$0xff]
        %v898 = vld [vmem:[%s797 + $0x20] sm:$0xff]
        %v899 = vld [vmem:[%s797 + $0x28] sm:$0xff]
        %v900 = vld [vmem:[%s797 + $0x30] sm:$0xff]
        %v901 = vld [vmem:[%s797 + $0x38] sm:$0xff]
        %v902 = vld [vmem:[%s797 + $0x40] sm:$0xff]
        %v903 = vld [vmem:[%s797 + $0x48] sm:$0xff]
        %v904 = vld [vmem:[%s797 + $0x50] sm:$0xff]
        %v905 = vld [vmem:[%s797 + $0x58] sm:$0xff]
        %v906 = vld [vmem:[%s797 + $0x60] sm:$0xff]
        %v907 = vld [vmem:[%s797 + $0x68] sm:$0xff]
        %v908 = vld [vmem:[%s797 + $0x70] sm:$0xff]
        %v909 = vld [vmem:[%s797 + $0x78] sm:$0xff]
        %v910 = vpack.c.bf16 %v895, %v894
        %v911 = vpack.c.bf16 %v897, %v896
        %v912 = vpack.c.bf16 %v899, %v898
        %v913 = vpack.c.bf16 %v901, %v900
        %v914 = vpack.c.bf16 %v903, %v902
        %v915 = vpack.c.bf16 %v905, %v904
        %v916 = vpack.c.bf16 %v907, %v906
        %v917 = vpack.c.bf16 %v909, %v908
        %v918 = vld [vmem:[%s708] sm:$0xff]
        %919 = vmatpush.bf16.msra.mxu0 %v893
        %920 = vmatpush.bf16.msra.mxu0 %v892
        %921 = vmatpush.bf16.msra.mxu0 %v891
        %922 = vmatpush.bf16.msra.mxu0 %v890
        %923 = vmatpush.bf16.msra.mxu0 %v889
        %924 = vmatpush.bf16.msra.mxu0 %v888
        %925 = vmatpush.bf16.msra.mxu0 %v887
        %926 = vmatpush.bf16.msra.mxu0 %v886
        %927 = vmatmul.bf16.gmra.mxu0 %v863
        %v928 = vpop.f32.mrf.mxu0
        %v929 = vadd.f32 0.0, %v928
        %v930 = vpop.f32.mrf.mxu0
        %931 = vdwg.mxu0
        %v932 = vadd.f32 %v918, %v929
        %vm933 = vcmask 64512
        %934 = vst.msk [vmem:[%s708] sm:$0xff] %vm933, %v932
        %s935 = scalar_lea.vmem %s708, 32 [#allocation2]
        %v936 = vld [vmem:[%s935] sm:$0xff]
        %937 = vmatpush.bf16.msra.mxu0 %v917
        %938 = vmatpush.bf16.msra.mxu0 %v916
        %939 = vmatpush.bf16.msra.mxu0 %v915
        %940 = vmatpush.bf16.msra.mxu0 %v914
        %941 = vmatpush.bf16.msra.mxu0 %v913
        %942 = vmatpush.bf16.msra.mxu0 %v912
        %943 = vmatpush.bf16.msra.mxu0 %v911
        %944 = vmatpush.bf16.msra.mxu0 %v910
        %945 = vmatmul.bf16.gmra.mxu0 %v869
        %v946 = vpop.f32.mrf.mxu0
        %v947 = vadd.f32 0.0, %v946
        %v948 = vpop.f32.mrf.mxu0
        %949 = vdwg.mxu0
        %v950 = vadd.f32 %v936, %v947
        %951 = vst.msk [vmem:[%s935] sm:$0xff] %vm933, %v950
        %v952 = vld [vmem:[%s755] sm:$0xff]
        %v953 = vld [vmem:[%s755 + $0x8] sm:$0xff]
        %v954 = vld [vmem:[%s755 + $0x10] sm:$0xff]
        %v955 = vld [vmem:[%s755 + $0x18] sm:$0xff]
        %v956 = vld [vmem:[%s755 + $0x20] sm:$0xff]
        %v957 = vld [vmem:[%s755 + $0x28] sm:$0xff]
        %v958 = vld [vmem:[%s755 + $0x30] sm:$0xff]
        %v959 = vld [vmem:[%s755 + $0x38] sm:$0xff]
        %v960 = vld [vmem:[%s755 + $0x40] sm:$0xff]
        %v961 = vld [vmem:[%s755 + $0x48] sm:$0xff]
        %v962 = vld [vmem:[%s755 + $0x50] sm:$0xff]
        %v963 = vld [vmem:[%s755 + $0x58] sm:$0xff]
        %v964 = vld [vmem:[%s755 + $0x60] sm:$0xff]
        %v965 = vld [vmem:[%s755 + $0x68] sm:$0xff]
        %v966 = vld [vmem:[%s755 + $0x70] sm:$0xff]
        %v967 = vld [vmem:[%s755 + $0x78] sm:$0xff]
        %v968 = vpack.c.bf16 %v953, %v952
        %v969 = vpack.c.bf16 %v955, %v954
        %v970 = vpack.c.bf16 %v957, %v956
        %v971 = vpack.c.bf16 %v959, %v958
        %v972 = vpack.c.bf16 %v961, %v960
        %v973 = vpack.c.bf16 %v963, %v962
        %v974 = vpack.c.bf16 %v965, %v964
        %v975 = vpack.c.bf16 %v967, %v966
        %v976 = vld [vmem:[%s811] sm:$0xff]
        %v977 = vld [vmem:[%s811 + $0x8] sm:$0xff]
        %v978 = vld [vmem:[%s811 + $0x10] sm:$0xff]
        %v979 = vld [vmem:[%s811 + $0x18] sm:$0xff]
        %v980 = vld [vmem:[%s811 + $0x20] sm:$0xff]
        %v981 = vld [vmem:[%s811 + $0x28] sm:$0xff]
        %v982 = vld [vmem:[%s811 + $0x30] sm:$0xff]
        %v983 = vld [vmem:[%s811 + $0x38] sm:$0xff]
        %v984 = vld [vmem:[%s811 + $0x40] sm:$0xff]
        %v985 = vld [vmem:[%s811 + $0x48] sm:$0xff]
        %v986 = vld [vmem:[%s811 + $0x50] sm:$0xff]
        %v987 = vld [vmem:[%s811 + $0x58] sm:$0xff]
        %v988 = vld [vmem:[%s811 + $0x60] sm:$0xff]
        %v989 = vld [vmem:[%s811 + $0x68] sm:$0xff]
        %v990 = vld [vmem:[%s811 + $0x70] sm:$0xff]
        %v991 = vld [vmem:[%s811 + $0x78] sm:$0xff]
        %v992 = vpack.c.bf16 %v977, %v976
        %v993 = vpack.c.bf16 %v979, %v978
        %v994 = vpack.c.bf16 %v981, %v980
        %v995 = vpack.c.bf16 %v983, %v982
        %v996 = vpack.c.bf16 %v985, %v984
        %v997 = vpack.c.bf16 %v987, %v986
        %v998 = vpack.c.bf16 %v989, %v988
        %v999 = vpack.c.bf16 %v991, %v990
        %s1000 = scalar_lea.vmem %s708, 8 [#allocation2]
        %v1001 = vld [vmem:[%s1000] sm:$0xff]
        %1002 = vmatpush.bf16.msra.mxu0 %v975
        %1003 = vmatpush.bf16.msra.mxu0 %v974
        %1004 = vmatpush.bf16.msra.mxu0 %v973
        %1005 = vmatpush.bf16.msra.mxu0 %v972
        %1006 = vmatpush.bf16.msra.mxu0 %v971
        %1007 = vmatpush.bf16.msra.mxu0 %v970
        %1008 = vmatpush.bf16.msra.mxu0 %v969
        %1009 = vmatpush.bf16.msra.mxu0 %v968
        %1010 = vmatmul.bf16.gmra.mxu0 %v863
        %v1011 = vpop.f32.mrf.mxu0
        %v1012 = vadd.f32 0.0, %v1011
        %v1013 = vpop.f32.mrf.mxu0
        %1014 = vdwg.mxu0
        %v1015 = vadd.f32 %v1001, %v1012
        %1016 = vst.msk [vmem:[%s1000] sm:$0xff] %vm933, %v1015
        %s1017 = scalar_lea.vmem %s708, 40 [#allocation2]
        %v1018 = vld [vmem:[%s1017] sm:$0xff]
        %1019 = vmatpush.bf16.msra.mxu0 %v999
        %1020 = vmatpush.bf16.msra.mxu0 %v998
        %1021 = vmatpush.bf16.msra.mxu0 %v997
        %1022 = vmatpush.bf16.msra.mxu0 %v996
        %1023 = vmatpush.bf16.msra.mxu0 %v995
        %1024 = vmatpush.bf16.msra.mxu0 %v994
        %1025 = vmatpush.bf16.msra.mxu0 %v993
        %1026 = vmatpush.bf16.msra.mxu0 %v992
        %1027 = vmatmul.bf16.gmra.mxu0 %v869
        %v1028 = vpop.f32.mrf.mxu0
        %v1029 = vadd.f32 0.0, %v1028
        %v1030 = vpop.f32.mrf.mxu0
        %1031 = vdwg.mxu0
        %v1032 = vadd.f32 %v1018, %v1029
        %1033 = vst.msk [vmem:[%s1017] sm:$0xff] %vm933, %v1032
        %v1034 = vld [vmem:[%s769] sm:$0xff]
        %v1035 = vld [vmem:[%s769 + $0x8] sm:$0xff]
        %v1036 = vld [vmem:[%s769 + $0x10] sm:$0xff]
        %v1037 = vld [vmem:[%s769 + $0x18] sm:$0xff]
        %v1038 = vld [vmem:[%s769 + $0x20] sm:$0xff]
        %v1039 = vld [vmem:[%s769 + $0x28] sm:$0xff]
        %v1040 = vld [vmem:[%s769 + $0x30] sm:$0xff]
        %v1041 = vld [vmem:[%s769 + $0x38] sm:$0xff]
        %v1042 = vld [vmem:[%s769 + $0x40] sm:$0xff]
        %v1043 = vld [vmem:[%s769 + $0x48] sm:$0xff]
        %v1044 = vld [vmem:[%s769 + $0x50] sm:$0xff]
        %v1045 = vld [vmem:[%s769 + $0x58] sm:$0xff]
        %v1046 = vld [vmem:[%s769 + $0x60] sm:$0xff]
        %v1047 = vld [vmem:[%s769 + $0x68] sm:$0xff]
        %v1048 = vld [vmem:[%s769 + $0x70] sm:$0xff]
        %v1049 = vld [vmem:[%s769 + $0x78] sm:$0xff]
        %v1050 = vpack.c.bf16 %v1035, %v1034
        %v1051 = vpack.c.bf16 %v1037, %v1036
        %v1052 = vpack.c.bf16 %v1039, %v1038
        %v1053 = vpack.c.bf16 %v1041, %v1040
        %v1054 = vpack.c.bf16 %v1043, %v1042
        %v1055 = vpack.c.bf16 %v1045, %v1044
        %v1056 = vpack.c.bf16 %v1047, %v1046
        %v1057 = vpack.c.bf16 %v1049, %v1048
        %v1058 = vld [vmem:[%s825] sm:$0xff]
        %v1059 = vld [vmem:[%s825 + $0x8] sm:$0xff]
        %v1060 = vld [vmem:[%s825 + $0x10] sm:$0xff]
        %v1061 = vld [vmem:[%s825 + $0x18] sm:$0xff]
        %v1062 = vld [vmem:[%s825 + $0x20] sm:$0xff]
        %v1063 = vld [vmem:[%s825 + $0x28] sm:$0xff]
        %v1064 = vld [vmem:[%s825 + $0x30] sm:$0xff]
        %v1065 = vld [vmem:[%s825 + $0x38] sm:$0xff]
        %v1066 = vld [vmem:[%s825 + $0x40] sm:$0xff]
        %v1067 = vld [vmem:[%s825 + $0x48] sm:$0xff]
        %v1068 = vld [vmem:[%s825 + $0x50] sm:$0xff]
        %v1069 = vld [vmem:[%s825 + $0x58] sm:$0xff]
        %v1070 = vld [vmem:[%s825 + $0x60] sm:$0xff]
        %v1071 = vld [vmem:[%s825 + $0x68] sm:$0xff]
        %v1072 = vld [vmem:[%s825 + $0x70] sm:$0xff]
        %v1073 = vld [vmem:[%s825 + $0x78] sm:$0xff]
        %v1074 = vpack.c.bf16 %v1059, %v1058
        %v1075 = vpack.c.bf16 %v1061, %v1060
        %v1076 = vpack.c.bf16 %v1063, %v1062
        %v1077 = vpack.c.bf16 %v1065, %v1064
        %v1078 = vpack.c.bf16 %v1067, %v1066
        %v1079 = vpack.c.bf16 %v1069, %v1068
        %v1080 = vpack.c.bf16 %v1071, %v1070
        %v1081 = vpack.c.bf16 %v1073, %v1072
        %s1082 = scalar_lea.vmem %s708, 16 [#allocation2]
        %v1083 = vld [vmem:[%s1082] sm:$0xff]
        %1084 = vmatpush.bf16.msra.mxu0 %v1057
        %1085 = vmatpush.bf16.msra.mxu0 %v1056
        %1086 = vmatpush.bf16.msra.mxu0 %v1055
        %1087 = vmatpush.bf16.msra.mxu0 %v1054
        %1088 = vmatpush.bf16.msra.mxu0 %v1053
        %1089 = vmatpush.bf16.msra.mxu0 %v1052
        %1090 = vmatpush.bf16.msra.mxu0 %v1051
        %1091 = vmatpush.bf16.msra.mxu0 %v1050
        %1092 = vmatmul.bf16.gmra.mxu0 %v863
        %v1093 = vpop.f32.mrf.mxu0
        %v1094 = vadd.f32 0.0, %v1093
        %v1095 = vpop.f32.mrf.mxu0
        %1096 = vdwg.mxu0
        %v1097 = vadd.f32 %v1083, %v1094
        %1098 = vst.msk [vmem:[%s1082] sm:$0xff] %vm933, %v1097
        %s1099 = scalar_lea.vmem %s708, 48 [#allocation2]
        %v1100 = vld [vmem:[%s1099] sm:$0xff]
        %1101 = vmatpush.bf16.msra.mxu0 %v1081
        %1102 = vmatpush.bf16.msra.mxu0 %v1080
        %1103 = vmatpush.bf16.msra.mxu0 %v1079
        %1104 = vmatpush.bf16.msra.mxu0 %v1078
        %1105 = vmatpush.bf16.msra.mxu0 %v1077
        %1106 = vmatpush.bf16.msra.mxu0 %v1076
        %1107 = vmatpush.bf16.msra.mxu0 %v1075
        %1108 = vmatpush.bf16.msra.mxu0 %v1074
        %1109 = vmatmul.bf16.gmra.mxu0 %v869
        %v1110 = vpop.f32.mrf.mxu0
        %v1111 = vadd.f32 0.0, %v1110
        %v1112 = vpop.f32.mrf.mxu0
        %1113 = vdwg.mxu0
        %v1114 = vadd.f32 %v1100, %v1111
        %1115 = vst.msk [vmem:[%s1099] sm:$0xff] %vm933, %v1114
        %v1116 = vld [vmem:[%s783] sm:$0xff]
        %v1117 = vld [vmem:[%s783 + $0x8] sm:$0xff]
        %v1118 = vld [vmem:[%s783 + $0x10] sm:$0xff]
        %v1119 = vld [vmem:[%s783 + $0x18] sm:$0xff]
        %v1120 = vld [vmem:[%s783 + $0x20] sm:$0xff]
        %v1121 = vld [vmem:[%s783 + $0x28] sm:$0xff]
        %v1122 = vld [vmem:[%s783 + $0x30] sm:$0xff]
        %v1123 = vld [vmem:[%s783 + $0x38] sm:$0xff]
        %v1124 = vld [vmem:[%s783 + $0x40] sm:$0xff]
        %v1125 = vld [vmem:[%s783 + $0x48] sm:$0xff]
        %v1126 = vld [vmem:[%s783 + $0x50] sm:$0xff]
        %v1127 = vld [vmem:[%s783 + $0x58] sm:$0xff]
        %v1128 = vld [vmem:[%s783 + $0x60] sm:$0xff]
        %v1129 = vld [vmem:[%s783 + $0x68] sm:$0xff]
        %v1130 = vld [vmem:[%s783 + $0x70] sm:$0xff]
        %v1131 = vld [vmem:[%s783 + $0x78] sm:$0xff]
        %v1132 = vpack.c.bf16 %v1117, %v1116
        %v1133 = vpack.c.bf16 %v1119, %v1118
        %v1134 = vpack.c.bf16 %v1121, %v1120
        %v1135 = vpack.c.bf16 %v1123, %v1122
        %v1136 = vpack.c.bf16 %v1125, %v1124
        %v1137 = vpack.c.bf16 %v1127, %v1126
        %v1138 = vpack.c.bf16 %v1129, %v1128
        %v1139 = vpack.c.bf16 %v1131, %v1130
        %v1140 = vld [vmem:[%s839] sm:$0xff]
        %v1141 = vld [vmem:[%s839 + $0x8] sm:$0xff]
        %v1142 = vld [vmem:[%s839 + $0x10] sm:$0xff]
        %v1143 = vld [vmem:[%s839 + $0x18] sm:$0xff]
        %v1144 = vld [vmem:[%s839 + $0x20] sm:$0xff]
        %v1145 = vld [vmem:[%s839 + $0x28] sm:$0xff]
        %v1146 = vld [vmem:[%s839 + $0x30] sm:$0xff]
        %v1147 = vld [vmem:[%s839 + $0x38] sm:$0xff]
        %v1148 = vld [vmem:[%s839 + $0x40] sm:$0xff]
        %v1149 = vld [vmem:[%s839 + $0x48] sm:$0xff]
        %v1150 = vld [vmem:[%s839 + $0x50] sm:$0xff]
        %v1151 = vld [vmem:[%s839 + $0x58] sm:$0xff]
        %v1152 = vld [vmem:[%s839 + $0x60] sm:$0xff]
        %v1153 = vld [vmem:[%s839 + $0x68] sm:$0xff]
        %v1154 = vld [vmem:[%s839 + $0x70] sm:$0xff]
        %v1155 = vld [vmem:[%s839 + $0x78] sm:$0xff]
        %v1156 = vpack.c.bf16 %v1141, %v1140
        %v1157 = vpack.c.bf16 %v1143, %v1142
        %v1158 = vpack.c.bf16 %v1145, %v1144
        %v1159 = vpack.c.bf16 %v1147, %v1146
        %v1160 = vpack.c.bf16 %v1149, %v1148
        %v1161 = vpack.c.bf16 %v1151, %v1150
        %v1162 = vpack.c.bf16 %v1153, %v1152
        %v1163 = vpack.c.bf16 %v1155, %v1154
        %s1164 = scalar_lea.vmem %s708, 24 [#allocation2]
        %v1165 = vld [vmem:[%s1164] sm:$0xff]
        %1166 = vmatpush.bf16.msra.mxu0 %v1139
        %1167 = vmatpush.bf16.msra.mxu0 %v1138
        %1168 = vmatpush.bf16.msra.mxu0 %v1137
        %1169 = vmatpush.bf16.msra.mxu0 %v1136
        %1170 = vmatpush.bf16.msra.mxu0 %v1135
        %1171 = vmatpush.bf16.msra.mxu0 %v1134
        %1172 = vmatpush.bf16.msra.mxu0 %v1133
        %1173 = vmatpush.bf16.msra.mxu0 %v1132
        %1174 = vmatmul.bf16.gmra.mxu0 %v863
        %v1175 = vpop.f32.mrf.mxu0
        %v1176 = vadd.f32 0.0, %v1175
        %v1177 = vpop.f32.mrf.mxu0
        %1178 = vdwg.mxu0
        %v1179 = vadd.f32 %v1165, %v1176
        %1180 = vst.msk [vmem:[%s1164] sm:$0xff] %vm933, %v1179
        %s1181 = scalar_lea.vmem %s708, 56 [#allocation2]
        %v1182 = vld [vmem:[%s1181] sm:$0xff]
        %1183 = vmatpush.bf16.msra.mxu0 %v1163
        %1184 = vmatpush.bf16.msra.mxu0 %v1162
        %1185 = vmatpush.bf16.msra.mxu0 %v1161
        %1186 = vmatpush.bf16.msra.mxu0 %v1160
        %1187 = vmatpush.bf16.msra.mxu0 %v1159
        %1188 = vmatpush.bf16.msra.mxu0 %v1158
        %1189 = vmatpush.bf16.msra.mxu0 %v1157
        %1190 = vmatpush.bf16.msra.mxu0 %v1156
        %1191 = vmatmul.bf16.gmra.mxu0 %v869
        %v1192 = vpop.f32.mrf.mxu0
        %v1193 = vadd.f32 0.0, %v1192
        %v1194 = vpop.f32.mrf.mxu0
        %1195 = vdwg.mxu0
        %v1196 = vadd.f32 %v1182, %v1193
        %1197 = vst.msk [vmem:[%s1181] sm:$0xff] %vm933, %v1196
        %s1198 = sand.u32 %s373, 1
        %s1199 = scalar_lea.sflag [#allocation3], %s1198
        %s1200 = sand.u32 %s373, 1
        %s1201 = smul.addr %s1200, 64
        %s1202 = scalar_lea.vmem [#allocation2], %s1201
        // Predicated region
        $region65: #{tpu_custom_call.1} parent=59 // pred_check
          %p1203 = pneg %p383
        $region66: #{tpu_custom_call.1} parent=59 // pred_check_branch
          %1205 = sbr.rel (%p1203) target = $region68
        $region67: #{tpu_custom_call.1} parent=59 // pred_region
          %1207 = vsyncadd %s1199, 0
          %s1208 = smul.addr %s30, 8
          %s1209 = smul.addr %s29, 16
          %s1210 = sadd.s32 %s1208, %s1209
          %s1211 = smul.addr %s1210, 8
          %s1212 = scalar_lea.hbm %s10, %s1211
          %s1213 = sshll.u32 %s1202, 4
          %s1214 = int_to_ptr.vmem [resolvable:$true] %s1213
          %s1215 = sshll.u32 %s1212, 4
          %s1216 = int_to_ptr.hbm [resolvable:$true] %s1215
          %1221 = dma.vmem_to_hbm [thread:$0]  %s1214, 1024, %s1216, %s1199, 128, 128, 8
        $region68: #{tpu_custom_call.1} parent=59 // pred_fallthru
          _
      $region60: #{tpu_custom_call.1} parent=5 // pred_fallthru
        _
      %p1222 = scmp.le.s32.totalorder 2, %s19
      // Predicated region
      $region69: #{tpu_custom_call.1} parent=5 // pred_check
        %p1223 = pneg %p1222
      $region70: #{tpu_custom_call.1} parent=5 // pred_check_branch
        %1225 = sbr.rel (%p1223) target = $region72
      $region71: #{tpu_custom_call.1} parent=5 // pred_region
        %s1226 = ssub.s32 %s19, 2
        // Predicated region
        $region73: #{tpu_custom_call.1} parent=71 // pred_check
          %p1227 = pneg %p389
        $region74: #{tpu_custom_call.1} parent=71 // pred_check_branch
          %1229 = sbr.rel (%p1227) target = $region76
        $region75: #{tpu_custom_call.1} parent=71 // pred_region
          %s1230 = sand.u32 %s374, 1
          %s1231 = scalar_lea.sflag [#allocation3], %s1230
          %s1232 = sand.u32 %s374, 1
          %s1233 = smul.addr %s1232, 64
          %s1234 = scalar_lea.vmem [#allocation2], %s1233
          %1236 = dma.done %s1231, 1024
        $region76: #{tpu_custom_call.1} parent=71 // pred_fallthru
          _
      $region72: #{tpu_custom_call.1} parent=5 // pred_fallthru
        _
    $region6: #{tpu_custom_call.1} parent=1 // loop_footer
      %s23 = sadd.s32 1, %s19
    $region7: #{tpu_custom_call.1} parent=1 // loop_footer_branch
      %18 = sbr.rel target = $region3
    $region8: #{tpu_custom_call.1} parent=1 // loop_exit
      _
    %1237 = vsyncpa [#allocation3], 1
    %s1238 = scalar_lea.sflag [#allocation3], 1
    %1239 = vsyncpa %s1238, 1

</llo_original>
